<compile_context>
chip_gen: v7x
topology: tpu7x:2x2x1
jax: 0.10.0
libtpu: 0.0.40
codegen_flags: <defaults>
</compile_context>

<pallas_src>
import functools

import jax
import jax.numpy as jnp
import numpy as np
from jax import lax
from jax.experimental import pallas as pl
from jax.experimental.pallas import tpu as pltpu


_VMEM_LIMIT_BYTES = 32 * 1024 * 1024    # safe scoped-VMEM on v5e/v6e/v7x
_CHUNK_VMEM_BUDGET = 8 * 1024 * 1024    # budget for streamed per-chunk buffers


# --------------------------- helpers -----------------------------------------
def _round_up(x, m):
    return (x + m - 1) // m * m


def _pad_gates(a, H, Hp):
    """Pad the leading 4*H (PyTorch gate order i,f,g,o) axis to 4*Hp,
    zero-padding each gate to its own 128-lane-aligned Hp-wide block."""
    rest = a.shape[1:]
    a = a.reshape(4, H, *rest)
    a = jnp.pad(a, [(0, 0), (0, Hp - H)] + [(0, 0)] * len(rest))
    return a.reshape(4 * Hp, *rest)


# ------------- Pallas kernel 1/2: fused input-proj + LSTM recurrence ----------
def _lstm_fused_kernel(t_true, mask_tail, emb_ref, wih_ref, bias_ref, whh_ref,
                       h0_ref, c0_ref, hs_ref, hT_ref, cT_ref,
                       gx_sc, h_sc, c_sc):
    blk = pl.program_id(0)
    Bp, Hp = h_sc.shape
    Tc = emb_ref.shape[0] // Bp
    mm_dtype = whh_ref.dtype

    @pl.when(blk == 0)
    def _():
        h_sc[...] = h0_ref[...]
        c_sc[...] = c0_ref[...]

    # Fused, hoisted input projection for the whole chunk: ONE MXU matmul over
    # Tc*Bp rows (bf16 operands, f32 accumulate).  Result lands in VMEM scratch
    # so the per-step loop streams (Bp, 4Hp) slices instead of holding a
    # 4Hp-wide value live across the unrolled loop.
    gx_sc[...] = (jnp.dot(emb_ref[...], wih_ref[...],
                          preferred_element_type=jnp.float32) + bias_ref[...])

    def step(t, carry):
        h_prev, c_prev = carry
        row = pl.multiple_of(t * Bp, Bp)
        # Recurrent matmul: stream W_hh^T straight from VMEM (do NOT hoist it
        # into a value -- a (Hp, 4Hp) f32 value is the whole vreg file).
        gates = gx_sc[pl.ds(row, Bp), :] + jnp.dot(
            h_prev.astype(mm_dtype), whh_ref[...],
            preferred_element_type=jnp.float32)
        # 128-lane-aligned gate slices (free layout views); gate math in f32.
        i = jax.nn.sigmoid(gates[:, 0 * Hp:1 * Hp])
        f = jax.nn.sigmoid(gates[:, 1 * Hp:2 * Hp])
        g = jnp.tanh(gates[:, 2 * Hp:3 * Hp])
        o = jax.nn.sigmoid(gates[:, 3 * Hp:4 * Hp])
        c = f * c_prev + i * g
        h = o * jnp.tanh(c)
        if mask_tail:
            # Ragged last chunk: steps past the true sequence length are
            # no-ops so h_T / c_T stay correct.
            keep = (blk * Tc + t) < t_true
            h = jnp.where(keep, h, h_prev)
            c = jnp.where(keep, c, c_prev)
        hs_ref[pl.ds(row, Bp), :] = h.astype(hs_ref.dtype)
        return h, c

    h_fin, c_fin = lax.fori_loop(0, Tc, step, (h_sc[...], c_sc[...]),
                                 unroll=min(Tc, 8))
    h_sc[...] = h_fin
    c_sc[...] = c_fin

    @pl.when(blk == pl.num_programs(0) - 1)
    def _():
        hT_ref[...] = h_fin
        cT_ref[...] = c_fin


def lstm_fused_pallas(emb2d, wih_t, bias, whh_t, h0, c0, *, t_steps, bp,
                      max_chunk=32, hs_dtype=jnp.float32):
    """emb2d: (T*Bp, E) time-major rows; wih_t: (E, 4Hp); bias: (1, 4Hp) f32;
    whh_t: (Hp, 4Hp); h0/c0: (Bp, Hp) f32.
    Returns (hs (Tp*Bp, Hp) hs_dtype, h_T (Bp, Hp) f32, c_T (Bp, Hp) f32)."""
    E = emb2d.shape[1]
    Hp = whh_t.shape[0]
    T = t_steps

    # Time chunk from a VMEM budget: double-buffered emb in, double-buffered
    # hs out, single-buffered f32 gates scratch.
    per_step = bp * (2 * E * emb2d.dtype.itemsize
                     + 2 * Hp * jnp.dtype(hs_dtype).itemsize
                     + 4 * Hp * 4)
    Tc = int(max(1, min(T, max_chunk, _CHUNK_VMEM_BUDGET // per_step)))
    Tp = (T + Tc - 1) // Tc * Tc
    mask_tail = Tp != T
    if mask_tail:
        emb2d = jnp.pad(emb2d, ((0, (Tp - T) * bp), (0, 0)))

    grid_spec = pltpu.PrefetchScalarGridSpec(
        num_scalar_prefetch=0,
        grid=(Tp // Tc,),
        in_specs=[
            pl.BlockSpec((Tc * bp, E), lambda i: (i, 0)),     # emb chunk
            pl.BlockSpec((E, 4 * Hp), lambda i: (0, 0)),      # W_ih^T (invariant)
            pl.BlockSpec((1, 4 * Hp), lambda i: (0, 0)),      # b_ih + b_hh
            pl.BlockSpec((Hp, 4 * Hp), lambda i: (0, 0)),     # W_hh^T (invariant)
            pl.BlockSpec((bp, Hp), lambda i: (0, 0)),         # h0
            pl.BlockSpec((bp, Hp), lambda i: (0, 0)),         # c0
        ],
        out_specs=[
            pl.BlockSpec((Tc * bp, Hp), lambda i: (i, 0)),    # per-step h rows
            pl.BlockSpec((bp, Hp), lambda i: (0, 0)),         # h_T
            pl.BlockSpec((bp, Hp), lambda i: (0, 0)),         # c_T
        ],
        scratch_shapes=[
            pltpu.VMEM((Tc * bp, 4 * Hp), jnp.float32),       # chunk gates_x
            pltpu.VMEM((bp, Hp), jnp.float32),                # h carry
            pltpu.VMEM((bp, Hp), jnp.float32),                # c carry
        ],
    )
    kernel = functools.partial(_lstm_fused_kernel, T, mask_tail)
    return pl.pallas_call(
        kernel,
        out_shape=(
            jax.ShapeDtypeStruct((Tp * bp, Hp), hs_dtype),
            jax.ShapeDtypeStruct((bp, Hp), jnp.float32),
            jax.ShapeDtypeStruct((bp, Hp), jnp.float32),
        ),
        grid_spec=grid_spec,
        compiler_params=pltpu.CompilerParams(
            dimension_semantics=("arbitrary",),   # time is a true recurrence
            vmem_limit_bytes=_VMEM_LIMIT_BYTES),
    )(emb2d, wih_t, bias, whh_t, h0, c0)


# --------------- Pallas kernel 2/2: M/N-tiled matmul + bias --------------------
def _matmul_bias_kernel(x_ref, w_ref, b_ref, o_ref):
    o_ref[...] = (jnp.dot(x_ref[...], w_ref[...],
                          preferred_element_type=jnp.float32)
                  + b_ref[...]).astype(o_ref.dtype)


def matmul_bias_pallas(x, w, b, *, tm_target=512, tn_target=512):
    """x: (M, K), w: (K, N), b: (1, N) f32 -> (M, N) f32.
    Requires M % 8 == 0, N % 128 == 0.  M and N tiled; K (contraction) whole."""
    M, K = x.shape
    N = w.shape[1]
    assert M % 8 == 0 and N % 128 == 0, (M, N)

    tn = 128
    for cand in (512, 256):
        if cand <= tn_target and N % cand == 0:
            tn = cand
            break
    tm = min(M, tm_target)
    while M % tm:
        tm -= 8

    grid_spec = pltpu.PrefetchScalarGridSpec(
        num_scalar_prefetch=0,
        grid=(M // tm, N // tn),
        in_specs=[
            pl.BlockSpec((tm, K), lambda i, j: (i, 0)),     # LHS M-tile
            pl.BlockSpec((K, tn), lambda i, j: (0, j)),     # weight N-tile
            pl.BlockSpec((1, tn), lambda i, j: (0, j)),     # bias N-tile
        ],
        out_specs=pl.BlockSpec((tm, tn), lambda i, j: (i, j)),
    )
    return pl.pallas_call(
        _matmul_bias_kernel,
        out_shape=jax.ShapeDtypeStruct((M, N), jnp.float32),
        grid_spec=grid_spec,
        compiler_params=pltpu.CompilerParams(
            dimension_semantics=("parallel", "parallel"),
            vmem_limit_bytes=_VMEM_LIMIT_BYTES),
    )(x, w, b)


# --------------------------- Model wrapper ------------------------------------
def init_params(key, vocab_size, embed_size, hidden_size):
    k = jax.random.split(key, 7)
    s = 1.0 / np.sqrt(hidden_size)
    return {
        "embed": jax.random.normal(k[0], (vocab_size, embed_size), jnp.float32),
        # PyTorch LSTM parameter shapes: weight_ih (4H, E), weight_hh (4H, H)
        "w_ih": jax.random.uniform(k[1], (4 * hidden_size, embed_size),
                                   jnp.float32, -s, s),
        "w_hh": jax.random.uniform(k[2], (4 * hidden_size, hidden_size),
                                   jnp.float32, -s, s),
        "b_ih": jax.random.uniform(k[3], (4 * hidden_size,), jnp.float32, -s, s),
        "b_hh": jax.random.uniform(k[4], (4 * hidden_size,), jnp.float32, -s, s),
        # nn.Linear(hidden, vocab): weight (V, H), bias (V,)
        "w_lin": jax.random.uniform(k[5], (vocab_size, hidden_size),
                                    jnp.float32, -s, s),
        "b_lin": jax.random.uniform(k[6], (vocab_size,), jnp.float32, -s, s),
    }


@functools.partial(jax.jit, static_argnames=("max_chunk", "matmul_dtype"))
def rnn_model_forward(params, text, hidden, max_chunk=32,
                      matmul_dtype=jnp.bfloat16):
    """text: (T, B) int32; hidden = (h0, c0) each (1, B, H).
    Returns (out_vocab (T, B, V) f32, (h_T (1,B,H), c_T (1,B,H)) f32).
    MXU operands are cast to `matmul_dtype` (bf16 fast path / f32 validation);
    accumulation and gate math are always f32."""
    h0, c0 = hidden
    T, B = text.shape
    E = params["embed"].shape[1]
    H = params["w_hh"].shape[1]
    V = params["w_lin"].shape[0]

    Bp = _round_up(B, 8)          # sublane-pad batch
    Hp = _round_up(H, 128)        # lane-pad hidden (per gate)
    Vp = _round_up(V, 128)        # lane-pad vocab
    mm_dtype = jnp.dtype(matmul_dtype)

    # ---- glue: embedding gather (in matmul dtype) + zero padding -------------
    emb = jnp.take(params["embed"].astype(mm_dtype), text, axis=0)   # (T, B, E)
    emb_p = jnp.pad(emb, ((0, 0), (0, Bp - B), (0, 0)))              # (T, Bp, E)
    emb2d = emb_p.reshape(T * Bp, E)                                 # time-major rows

    # Gate-blocked, lane-padded weights.  All padded rows/columns/bias entries
    # and the h0/c0 pads are EXACTLY zero, so padded gate pre-activations are
    # exactly 0 -> g=0, c=h=0 in the padded lanes forever (holds in bf16 too).
    w_ih_p = _pad_gates(params["w_ih"], H, Hp)                            # (4Hp, E)
    w_hh_p = jnp.pad(_pad_gates(params["w_hh"], H, Hp),
                     ((0, 0), (0, Hp - H)))                               # (4Hp, Hp)
    bias_p = _pad_gates(params["b_ih"] + params["b_hh"], H, Hp)[None, :]  # (1, 4Hp) f32
    w_lin_p = jnp.pad(params["w_lin"], ((0, Vp - V), (0, Hp - H)))        # (Vp, Hp)
    b_lin_p = jnp.pad(params["b_lin"], (0, Vp - V))[None, :]              # (1, Vp) f32

    h0_p = jnp.pad(h0[0], ((0, Bp - B), (0, Hp - H)))                     # (Bp, Hp)
    c0_p = jnp.pad(c0[0], ((0, Bp - B), (0, Hp - H)))

    # ---- 1) fused input projection + serial recurrence (time-chunked) --------
    hs, hT, cT = lstm_fused_pallas(
        emb2d, w_ih_p.T.astype(mm_dtype), bias_p, w_hh_p.T.astype(mm_dtype),
        h0_p, c0_p, t_steps=T, bp=Bp, max_chunk=max_chunk, hs_dtype=mm_dtype)

    # ---- 2) hoisted output Linear over all T*Bp rows (M/N-tiled matmul) -------
    logits_p = matmul_bias_pallas(hs[:T * Bp], w_lin_p.T.astype(mm_dtype),
                                  b_lin_p)
    logits = logits_p.reshape(T, Bp, Vp)[:, :B, :V]

    return logits, (hT[:B, :H][None], cT[:B, :H][None])


def init_hidden(batch_size, hidden_size):
    z = jnp.zeros((1, batch_size, hidden_size), jnp.float32)
    return (z, z)


# --------------------------- Pure-JAX reference -------------------------------
def ref_forward(params, text, hidden):
    h, c = hidden[0][0], hidden[1][0]
    emb = params["embed"][text]
    H = h.shape[-1]

    def step(carry, x):
        h, c = carry
        gates = (x @ params["w_ih"].T + params["b_ih"]
                 + h @ params["w_hh"].T + params["b_hh"])
        i = jax.nn.sigmoid(gates[:, 0 * H:1 * H])
        f = jax.nn.sigmoid(gates[:, 1 * H:2 * H])
        g = jnp.tanh(gates[:, 2 * H:3 * H])
        o = jax.nn.sigmoid(gates[:, 3 * H:4 * H])
        c = f * c + i * g
        h = o * jnp.tanh(c)
        return (h, c), h

    (hT, cT), outs = lax.scan(step, (h, c), emb)
    logits = outs.reshape(-1, H) @ params["w_lin"].T + params["b_lin"]
    logits = logits.reshape(outs.shape[0], outs.shape[1], -1)
    return logits, (hT[None], cT[None])


# --------------------------------- Main ----------------------------------------
if __name__ == "__main__":
    VOCAB, EMBED, HIDDEN = 64, 32, 32
    T, B = 8, 2

    key = jax.random.PRNGKey(0)
    kp, kt = jax.random.split(key)
    params = init_params(kp, VOCAB, EMBED, HIDDEN)
    text = jax.random.randint(kt, (T, B), 0, VOCAB, dtype=jnp.int32)
    hidden = init_hidden(B, HIDDEN)

    ref_out, (ref_h, ref_c) = ref_forward(params, text, hidden)

    # f32 validation path (also exercises the ragged time-chunk masking: Tc=3).
    out32, (h32, c32) = rnn_model_forward(params, text, hidden,
                                          max_chunk=3, matmul_dtype=jnp.float32)
    jax.block_until_ready((out32, h32, c32))
    np.testing.assert_allclose(np.asarray(out32), np.asarray(ref_out),
                               rtol=1e-4, atol=1e-4)
    np.testing.assert_allclose(np.asarray(h32), np.asarray(ref_h),
                               rtol=1e-4, atol=1e-4)
    np.testing.assert_allclose(np.asarray(c32), np.asarray(ref_c),
                               rtol=1e-4, atol=1e-4)

    # bf16 MXU fast path (default): f32 accumulation, bf16-level tolerance.
    out_vocab, (hT, cT) = rnn_model_forward(params, text, hidden)
    jax.block_until_ready((out_vocab, hT, cT))
    np.testing.assert_allclose(np.asarray(out_vocab), np.asarray(ref_out),
                               rtol=8e-2, atol=8e-2)
    np.testing.assert_allclose(np.asarray(hT), np.asarray(ref_h),
                               rtol=8e-2, atol=8e-2)
    np.testing.assert_allclose(np.asarray(cT), np.asarray(ref_c),
                               rtol=8e-2, atol=8e-2)

    assert out_vocab.shape == (T, B, VOCAB)
    assert hT.shape == (1, B, HIDDEN) and cT.shape == (1, B, HIDDEN)
    print("KERNEL_OK")
</pallas_src>

<mosaic_0001>
module attributes {stable_mosaic.version = 11 : i64} {
  func.func @_matmul_bias_kernel(%arg0: i32, %arg1: i32, %arg2: memref<64x128xf32, #tpu.memory_space<vmem>>, %arg3: memref<128x128xf32, #tpu.memory_space<vmem>>, %arg4: memref<1x128xf32, #tpu.memory_space<vmem>>, %arg5: memref<64x128xf32, #tpu.memory_space<vmem>>) attributes {dimension_semantics = [#tpu.dimension_semantics<parallel>, #tpu.dimension_semantics<parallel>], iteration_bounds = array<i64: 1, 1>, scalar_prefetch = 0 : i64, scratch_operands = 0 : i64, tpu.core_type = #tpu.core_type<tc>, window_params = [{transform_indices = @transform_0, window_bounds = array<i64: 64, 128>}, {transform_indices = @transform_1, window_bounds = array<i64: 128, 128>}, {transform_indices = @transform_2, window_bounds = array<i64: 1, 128>}, {transform_indices = @transform_3, window_bounds = array<i64: 64, 128>}]} {
    %c0 = arith.constant 0 : index
    %c0_0 = arith.constant 0 : index
    %0 = vector.load %arg2[%c0, %c0_0] : memref<64x128xf32, #tpu.memory_space<vmem>>, vector<64x128xf32>
    %c0_1 = arith.constant 0 : index
    %c0_2 = arith.constant 0 : index
    %1 = vector.load %arg3[%c0_1, %c0_2] : memref<128x128xf32, #tpu.memory_space<vmem>>, vector<128x128xf32>
    %cst = arith.constant dense<0.000000e+00> : vector<64x128xf32>
    %2 = tpu.matmul %0, %1, %cst {dimension_numbers = #tpu.dot_dimension_numbers<[1], [0], [0], [1], [0, 0, 1, 1], [], []>} : vector<64x128xf32>, vector<128x128xf32>, vector<64x128xf32> -> vector<64x128xf32>
    %c0_3 = arith.constant 0 : index
    %c0_4 = arith.constant 0 : index
    %3 = vector.load %arg4[%c0_3, %c0_4] : memref<1x128xf32, #tpu.memory_space<vmem>>, vector<1x128xf32>
    %4 = vector.broadcast %3 : vector<1x128xf32> to vector<64x128xf32>
    %5 = arith.addf %2, %4 : vector<64x128xf32>
    %c0_5 = arith.constant 0 : index
    %c0_6 = arith.constant 0 : index
    %6 = vector.load %arg5[%c0_5, %c0_6] : memref<64x128xf32, #tpu.memory_space<vmem>>, vector<64x128xf32>
    tpu.vector_store %arg5[%c0_5, %c0_6], %5 {strides = array<i32>} : memref<64x128xf32, #tpu.memory_space<vmem>>, vector<64x128xf32>,
    return
  }
  func.func @transform_0(%arg0: i32, %arg1: i32) -> (i32, i32) {
    %c0_i32 = arith.constant 0 : i32
    %c0_i32_0 = arith.constant 0 : i32
    return %arg0, %c0_i32 : i32, i32
  }
  func.func @transform_1(%arg0: i32, %arg1: i32) -> (i32, i32) {
    %c0_i32 = arith.constant 0 : i32
    %c0_i32_0 = arith.constant 0 : i32
    return %c0_i32, %arg1 : i32, i32
  }
  func.func @transform_2(%arg0: i32, %arg1: i32) -> (i32, i32) {
    %c0_i32 = arith.constant 0 : i32
    %c0_i32_0 = arith.constant 0 : i32
    return %c0_i32, %arg1 : i32, i32
  }
  func.func @transform_3(%arg0: i32, %arg1: i32) -> (i32, i32) {
    %c0_i32 = arith.constant 0 : i32
    return %arg0, %arg1 : i32, i32
  }
}

module attributes {stable_mosaic.version = 11 : i64} {
  func.func @_lstm_fused_kernel(%arg0: i32, %arg1: memref<24x32xf32, #tpu.memory_space<vmem>>, %arg2: memref<32x512xf32, #tpu.memory_space<vmem>>, %arg3: memref<1x512xf32, #tpu.memory_space<vmem>>, %arg4: memref<128x512xf32, #tpu.memory_space<vmem>>, %arg5: memref<8x128xf32, #tpu.memory_space<vmem>>, %arg6: memref<8x128xf32, #tpu.memory_space<vmem>>, %arg7: memref<24x128xf32, #tpu.memory_space<vmem>>, %arg8: memref<8x128xf32, #tpu.memory_space<vmem>>, %arg9: memref<8x128xf32, #tpu.memory_space<vmem>>, %arg10: memref<24x512xf32, #tpu.memory_space<vmem>>, %arg11: memref<8x128xf32, #tpu.memory_space<vmem>>, %arg12: memref<8x128xf32, #tpu.memory_space<vmem>>) attributes {dimension_semantics = [#tpu.dimension_semantics<arbitrary>], iteration_bounds = array<i64: 3>, scalar_prefetch = 0 : i64, scratch_operands = 3 : i64, tpu.core_type = #tpu.core_type<tc>, window_params = [{transform_indices = @transform_0, window_bounds = array<i64: 24, 32>}, {pipeline_mode = #tpu.pipeline_mode<synchronous>, transform_indices = @transform_1, window_bounds = array<i64: 32, 512>}, {pipeline_mode = #tpu.pipeline_mode<synchronous>, transform_indices = @transform_2, window_bounds = array<i64: 1, 512>}, {pipeline_mode = #tpu.pipeline_mode<synchronous>, transform_indices = @transform_3, window_bounds = array<i64: 128, 512>}, {pipeline_mode = #tpu.pipeline_mode<synchronous>, transform_indices = @transform_4, window_bounds = array<i64: 8, 128>}, {pipeline_mode = #tpu.pipeline_mode<synchronous>, transform_indices = @transform_5, window_bounds = array<i64: 8, 128>}, {transform_indices = @transform_6, window_bounds = array<i64: 24, 128>}, {pipeline_mode = #tpu.pipeline_mode<synchronous>, transform_indices = @transform_7, window_bounds = array<i64: 8, 128>}, {pipeline_mode = #tpu.pipeline_mode<synchronous>, transform_indices = @transform_8, window_bounds = array<i64: 8, 128>}]} {
    %c0_i32 = arith.constant 0 : i32
    %0 = arith.cmpi eq, %arg0, %c0_i32 : i32
    %1 = arith.extui %0 : i1 to i32
    %c0_i32_0 = arith.constant 0 : i32
    %2 = arith.cmpi ne, %1, %c0_i32_0 : i32
    scf.if %2 {
      %c0_51 = arith.constant 0 : index
      %c0_52 = arith.constant 0 : index
      %134 = vector.load %arg5[%c0_51, %c0_52] : memref<8x128xf32, #tpu.memory_space<vmem>>, vector<8x128xf32>
      %c0_53 = arith.constant 0 : index
      %c0_54 = arith.constant 0 : index
      %135 = vector.load %arg11[%c0_53, %c0_54] : memref<8x128xf32, #tpu.memory_space<vmem>>, vector<8x128xf32>
      tpu.vector_store %arg11[%c0_53, %c0_54], %134 {strides = array<i32>} : memref<8x128xf32, #tpu.memory_space<vmem>>, vector<8x128xf32>,
      %c0_55 = arith.constant 0 : index
      %c0_56 = arith.constant 0 : index
      %136 = vector.load %arg6[%c0_55, %c0_56] : memref<8x128xf32, #tpu.memory_space<vmem>>, vector<8x128xf32>
      %c0_57 = arith.constant 0 : index
      %c0_58 = arith.constant 0 : index
      %137 = vector.load %arg12[%c0_57, %c0_58] : memref<8x128xf32, #tpu.memory_space<vmem>>, vector<8x128xf32>
      tpu.vector_store %arg12[%c0_57, %c0_58], %136 {strides = array<i32>} : memref<8x128xf32, #tpu.memory_space<vmem>>, vector<8x128xf32>,
    } else {
    }
    %c0 = arith.constant 0 : index
    %c0_1 = arith.constant 0 : index
    %3 = vector.load %arg1[%c0, %c0_1] : memref<24x32xf32, #tpu.memory_space<vmem>>, vector<24x32xf32>
    %c0_2 = arith.constant 0 : index
    %c0_3 = arith.constant 0 : index
    %4 = vector.load %arg2[%c0_2, %c0_3] : memref<32x512xf32, #tpu.memory_space<vmem>>, vector<32x512xf32>
    %cst = arith.constant dense<0.000000e+00> : vector<24x512xf32>
    %5 = tpu.matmul %3, %4, %cst {dimension_numbers = #tpu.dot_dimension_numbers<[1], [0], [0], [1], [0, 0, 1, 1], [], []>} : vector<24x32xf32>, vector<32x512xf32>, vector<24x512xf32> -> vector<24x512xf32>
    %c0_4 = arith.constant 0 : index
    %c0_5 = arith.constant 0 : index
    %6 = vector.load %arg3[%c0_4, %c0_5] : memref<1x512xf32, #tpu.memory_space<vmem>>, vector<1x512xf32>
    %7 = vector.broadcast %6 : vector<1x512xf32> to vector<24x512xf32>
    %8 = arith.addf %5, %7 : vector<24x512xf32>
    %c0_6 = arith.constant 0 : index
    %c0_7 = arith.constant 0 : index
    %9 = vector.load %arg10[%c0_6, %c0_7] : memref<24x512xf32, #tpu.memory_space<vmem>>, vector<24x512xf32>
    tpu.vector_store %arg10[%c0_6, %c0_7], %8 {strides = array<i32>} : memref<24x512xf32, #tpu.memory_space<vmem>>, vector<24x512xf32>,
    %c0_8 = arith.constant 0 : index
    %c0_9 = arith.constant 0 : index
    %10 = vector.load %arg11[%c0_8, %c0_9] : memref<8x128xf32, #tpu.memory_space<vmem>>, vector<8x128xf32>
    %c0_10 = arith.constant 0 : index
    %c0_11 = arith.constant 0 : index
    %11 = vector.load %arg12[%c0_10, %c0_11] : memref<8x128xf32, #tpu.memory_space<vmem>>, vector<8x128xf32>
    %c0_i32_12 = arith.constant 0 : i32
    %c8_i32 = arith.constant 8 : i32
    %12 = arith.muli %c0_i32_12, %c8_i32 : i32
    %13 = tpu.assume_multiple %12, 8 : i32
    %14 = arith.index_cast %13 : i32 to index
    %c0_13 = arith.constant 0 : index
    %15 = vector.load %arg10[%14, %c0_13] : memref<24x512xf32, #tpu.memory_space<vmem>>, vector<8x512xf32>
    %c0_14 = arith.constant 0 : index
    %c0_15 = arith.constant 0 : index
    %16 = vector.load %arg4[%c0_14, %c0_15] : memref<128x512xf32, #tpu.memory_space<vmem>>, vector<128x512xf32>
    %cst_16 = arith.constant dense<0.000000e+00> : vector<8x512xf32>
    %17 = tpu.matmul %10, %16, %cst_16 {dimension_numbers = #tpu.dot_dimension_numbers<[1], [0], [0], [1], [0, 0, 1, 1], [], []>} : vector<8x128xf32>, vector<128x512xf32>, vector<8x512xf32> -> vector<8x512xf32>
    %18 = arith.addf %15, %17 : vector<8x512xf32>
    %19 = vector.extract_strided_slice %18 {offsets = [0, 0], sizes = [8, 128], strides = [1, 1]} : vector<8x512xf32> to vector<8x128xf32>
    %20 = arith.negf %19 : vector<8x128xf32>
    %21 = math.exp %20 : vector<8x128xf32>
    %cst_17 = arith.constant 1.000000e+00 : f32
    %22 = vector.broadcast %cst_17 : f32 to vector<8x128xf32>
    %23 = arith.addf %22, %21 : vector<8x128xf32>
    %24 = arith.divf %22, %23 : vector<8x128xf32>
    %25 = vector.extract_strided_slice %18 {offsets = [0, 128], sizes = [8, 128], strides = [1, 1]} : vector<8x512xf32> to vector<8x128xf32>
    %26 = arith.negf %25 : vector<8x128xf32>
    %27 = math.exp %26 : vector<8x128xf32>
    %cst_18 = arith.constant 1.000000e+00 : f32
    %28 = vector.broadcast %cst_18 : f32 to vector<8x128xf32>
    %29 = arith.addf %28, %27 : vector<8x128xf32>
    %30 = arith.divf %28, %29 : vector<8x128xf32>
    %31 = vector.extract_strided_slice %18 {offsets = [0, 256], sizes = [8, 128], strides = [1, 1]} : vector<8x512xf32> to vector<8x128xf32>
    %32 = math.tanh %31 : vector<8x128xf32>
    %33 = vector.extract_strided_slice %18 {offsets = [0, 384], sizes = [8, 128], strides = [1, 1]} : vector<8x512xf32> to vector<8x128xf32>
    %34 = arith.negf %33 : vector<8x128xf32>
    %35 = math.exp %34 : vector<8x128xf32>
    %cst_19 = arith.constant 1.000000e+00 : f32
    %36 = vector.broadcast %cst_19 : f32 to vector<8x128xf32>
    %37 = arith.addf %36, %35 : vector<8x128xf32>
    %38 = arith.divf %36, %37 : vector<8x128xf32>
    %39 = arith.mulf %30, %11 : vector<8x128xf32>
    %40 = arith.mulf %24, %32 : vector<8x128xf32>
    %41 = arith.addf %39, %40 : vector<8x128xf32>
    %42 = math.tanh %41 : vector<8x128xf32>
    %43 = arith.mulf %38, %42 : vector<8x128xf32>
    %c3_i32 = arith.constant 3 : i32
    %44 = arith.muli %arg0, %c3_i32 : i32
    %45 = arith.addi %44, %c0_i32_12 : i32
    %c8_i32_20 = arith.constant 8 : i32
    %46 = arith.cmpi slt, %45, %c8_i32_20 : i32
    %47 = arith.select %46, %43, %10 : vector<8x128xf32>
    %48 = arith.select %46, %41, %11 : vector<8x128xf32>
    %49 = arith.index_cast %13 : i32 to index
    %c0_21 = arith.constant 0 : index
    %50 = vector.load %arg7[%49, %c0_21] : memref<24x128xf32, #tpu.memory_space<vmem>>, vector<8x128xf32>
    tpu.vector_store %arg7[%49, %c0_21], %47 {strides = array<i32>} : memref<24x128xf32, #tpu.memory_space<vmem>>, vector<8x128xf32>,
    %c1_i32 = arith.constant 1 : i32
    %c8_i32_22 = arith.constant 8 : i32
    %51 = arith.muli %c1_i32, %c8_i32_22 : i32
    %52 = tpu.assume_multiple %51, 8 : i32
    %53 = arith.index_cast %52 : i32 to index
    %c0_23 = arith.constant 0 : index
    %54 = vector.load %arg10[%53, %c0_23] : memref<24x512xf32, #tpu.memory_space<vmem>>, vector<8x512xf32>
    %c0_24 = arith.constant 0 : index
    %c0_25 = arith.constant 0 : index
    %55 = vector.load %arg4[%c0_24, %c0_25] : memref<128x512xf32, #tpu.memory_space<vmem>>, vector<128x512xf32>
    %cst_26 = arith.constant dense<0.000000e+00> : vector<8x512xf32>
    %56 = tpu.matmul %47, %55, %cst_26 {dimension_numbers = #tpu.dot_dimension_numbers<[1], [0], [0], [1], [0, 0, 1, 1], [], []>} : vector<8x128xf32>, vector<128x512xf32>, vector<8x512xf32> -> vector<8x512xf32>
    %57 = arith.addf %54, %56 : vector<8x512xf32>
    %58 = vector.extract_strided_slice %57 {offsets = [0, 0], sizes = [8, 128], strides = [1, 1]} : vector<8x512xf32> to vector<8x128xf32>
    %59 = arith.negf %58 : vector<8x128xf32>
    %60 = math.exp %59 : vector<8x128xf32>
    %cst_27 = arith.constant 1.000000e+00 : f32
    %61 = vector.broadcast %cst_27 : f32 to vector<8x128xf32>
    %62 = arith.addf %61, %60 : vector<8x128xf32>
    %63 = arith.divf %61, %62 : vector<8x128xf32>
    %64 = vector.extract_strided_slice %57 {offsets = [0, 128], sizes = [8, 128], strides = [1, 1]} : vector<8x512xf32> to vector<8x128xf32>
    %65 = arith.negf %64 : vector<8x128xf32>
    %66 = math.exp %65 : vector<8x128xf32>
    %cst_28 = arith.constant 1.000000e+00 : f32
    %67 = vector.broadcast %cst_28 : f32 to vector<8x128xf32>
    %68 = arith.addf %67, %66 : vector<8x128xf32>
    %69 = arith.divf %67, %68 : vector<8x128xf32>
    %70 = vector.extract_strided_slice %57 {offsets = [0, 256], sizes = [8, 128], strides = [1, 1]} : vector<8x512xf32> to vector<8x128xf32>
    %71 = math.tanh %70 : vector<8x128xf32>
    %72 = vector.extract_strided_slice %57 {offsets = [0, 384], sizes = [8, 128], strides = [1, 1]} : vector<8x512xf32> to vector<8x128xf32>
    %73 = arith.negf %72 : vector<8x128xf32>
    %74 = math.exp %73 : vector<8x128xf32>
    %cst_29 = arith.constant 1.000000e+00 : f32
    %75 = vector.broadcast %cst_29 : f32 to vector<8x128xf32>
    %76 = arith.addf %75, %74 : vector<8x128xf32>
    %77 = arith.divf %75, %76 : vector<8x128xf32>
    %78 = arith.mulf %69, %48 : vector<8x128xf32>
    %79 = arith.mulf %63, %71 : vector<8x128xf32>
    %80 = arith.addf %78, %79 : vector<8x128xf32>
    %81 = math.tanh %80 : vector<8x128xf32>
    %82 = arith.mulf %77, %81 : vector<8x128xf32>
    %c3_i32_30 = arith.constant 3 : i32
    %83 = arith.muli %arg0, %c3_i32_30 : i32
    %84 = arith.addi %83, %c1_i32 : i32
    %c8_i32_31 = arith.constant 8 : i32
    %85 = arith.cmpi slt, %84, %c8_i32_31 : i32
    %86 = arith.select %85, %82, %47 : vector<8x128xf32>
    %87 = arith.select %85, %80, %48 : vector<8x128xf32>
    %88 = arith.index_cast %52 : i32 to index
    %c0_32 = arith.constant 0 : index
    %89 = vector.load %arg7[%88, %c0_32] : memref<24x128xf32, #tpu.memory_space<vmem>>, vector<8x128xf32>
    tpu.vector_store %arg7[%88, %c0_32], %86 {strides = array<i32>} : memref<24x128xf32, #tpu.memory_space<vmem>>, vector<8x128xf32>,
    %c2_i32 = arith.constant 2 : i32
    %c8_i32_33 = arith.constant 8 : i32
    %90 = arith.muli %c2_i32, %c8_i32_33 : i32
    %91 = tpu.assume_multiple %90, 8 : i32
    %92 = arith.index_cast %91 : i32 to index
    %c0_34 = arith.constant 0 : index
    %93 = vector.load %arg10[%92, %c0_34] : memref<24x512xf32, #tpu.memory_space<vmem>>, vector<8x512xf32>
    %c0_35 = arith.constant 0 : index
    %c0_36 = arith.constant 0 : index
    %94 = vector.load %arg4[%c0_35, %c0_36] : memref<128x512xf32, #tpu.memory_space<vmem>>, vector<128x512xf32>
    %cst_37 = arith.constant dense<0.000000e+00> : vector<8x512xf32>
    %95 = tpu.matmul %86, %94, %cst_37 {dimension_numbers = #tpu.dot_dimension_numbers<[1], [0], [0], [1], [0, 0, 1, 1], [], []>} : vector<8x128xf32>, vector<128x512xf32>, vector<8x512xf32> -> vector<8x512xf32>
    %96 = arith.addf %93, %95 : vector<8x512xf32>
    %97 = vector.extract_strided_slice %96 {offsets = [0, 0], sizes = [8, 128], strides = [1, 1]} : vector<8x512xf32> to vector<8x128xf32>
    %98 = arith.negf %97 : vector<8x128xf32>
    %99 = math.exp %98 : vector<8x128xf32>
    %cst_38 = arith.constant 1.000000e+00 : f32
    %100 = vector.broadcast %cst_38 : f32 to vector<8x128xf32>
    %101 = arith.addf %100, %99 : vector<8x128xf32>
    %102 = arith.divf %100, %101 : vector<8x128xf32>
    %103 = vector.extract_strided_slice %96 {offsets = [0, 128], sizes = [8, 128], strides = [1, 1]} : vector<8x512xf32> to vector<8x128xf32>
    %104 = arith.negf %103 : vector<8x128xf32>
    %105 = math.exp %104 : vector<8x128xf32>
    %cst_39 = arith.constant 1.000000e+00 : f32
    %106 = vector.broadcast %cst_39 : f32 to vector<8x128xf32>
    %107 = arith.addf %106, %105 : vector<8x128xf32>
    %108 = arith.divf %106, %107 : vector<8x128xf32>
    %109 = vector.extract_strided_slice %96 {offsets = [0, 256], sizes = [8, 128], strides = [1, 1]} : vector<8x512xf32> to vector<8x128xf32>
    %110 = math.tanh %109 : vector<8x128xf32>
    %111 = vector.extract_strided_slice %96 {offsets = [0, 384], sizes = [8, 128], strides = [1, 1]} : vector<8x512xf32> to vector<8x128xf32>
    %112 = arith.negf %111 : vector<8x128xf32>
    %113 = math.exp %112 : vector<8x128xf32>
    %cst_40 = arith.constant 1.000000e+00 : f32
    %114 = vector.broadcast %cst_40 : f32 to vector<8x128xf32>
    %115 = arith.addf %114, %113 : vector<8x128xf32>
    %116 = arith.divf %114, %115 : vector<8x128xf32>
    %117 = arith.mulf %108, %87 : vector<8x128xf32>
    %118 = arith.mulf %102, %110 : vector<8x128xf32>
    %119 = arith.addf %117, %118 : vector<8x128xf32>
    %120 = math.tanh %119 : vector<8x128xf32>
    %121 = arith.mulf %116, %120 : vector<8x128xf32>
    %c3_i32_41 = arith.constant 3 : i32
    %122 = arith.muli %arg0, %c3_i32_41 : i32
    %123 = arith.addi %122, %c2_i32 : i32
    %c8_i32_42 = arith.constant 8 : i32
    %124 = arith.cmpi slt, %123, %c8_i32_42 : i32
    %125 = arith.select %124, %121, %86 : vector<8x128xf32>
    %126 = arith.select %124, %119, %87 : vector<8x128xf32>
    %127 = arith.index_cast %91 : i32 to index
    %c0_43 = arith.constant 0 : index
    %128 = vector.load %arg7[%127, %c0_43] : memref<24x128xf32, #tpu.memory_space<vmem>>, vector<8x128xf32>
    tpu.vector_store %arg7[%127, %c0_43], %125 {strides = array<i32>} : memref<24x128xf32, #tpu.memory_space<vmem>>, vector<8x128xf32>,
    %c3_i32_44 = arith.constant 3 : i32
    %c0_45 = arith.constant 0 : index
    %c0_46 = arith.constant 0 : index
    %129 = vector.load %arg11[%c0_45, %c0_46] : memref<8x128xf32, #tpu.memory_space<vmem>>, vector<8x128xf32>
    tpu.vector_store %arg11[%c0_45, %c0_46], %125 {strides = array<i32>} : memref<8x128xf32, #tpu.memory_space<vmem>>, vector<8x128xf32>,
    %c0_47 = arith.constant 0 : index
    %c0_48 = arith.constant 0 : index
    %130 = vector.load %arg12[%c0_47, %c0_48] : memref<8x128xf32, #tpu.memory_space<vmem>>, vector<8x128xf32>
    tpu.vector_store %arg12[%c0_47, %c0_48], %126 {strides = array<i32>} : memref<8x128xf32, #tpu.memory_space<vmem>>, vector<8x128xf32>,
    %c2_i32_49 = arith.constant 2 : i32
    %131 = arith.cmpi eq, %arg0, %c2_i32_49 : i32
    %132 = arith.extui %131 : i1 to i32
    %c0_i32_50 = arith.constant 0 : i32
    %133 = arith.cmpi ne, %132, %c0_i32_50 : i32
    scf.if %133 {
      %c0_51 = arith.constant 0 : index
      %c0_52 = arith.constant 0 : index
      %134 = vector.load %arg8[%c0_51, %c0_52] : memref<8x128xf32, #tpu.memory_space<vmem>>, vector<8x128xf32>
      tpu.vector_store %arg8[%c0_51, %c0_52], %125 {strides = array<i32>} : memref<8x128xf32, #tpu.memory_space<vmem>>, vector<8x128xf32>,
      %c0_53 = arith.constant 0 : index
      %c0_54 = arith.constant 0 : index
      %135 = vector.load %arg9[%c0_53, %c0_54] : memref<8x128xf32, #tpu.memory_space<vmem>>, vector<8x128xf32>
      tpu.vector_store %arg9[%c0_53, %c0_54], %126 {strides = array<i32>} : memref<8x128xf32, #tpu.memory_space<vmem>>, vector<8x128xf32>,
    } else {
    }
    return
  }
  func.func @transform_0(%arg0: i32) -> (i32, i32) {
    %c0_i32 = arith.constant 0 : i32
    %c0_i32_0 = arith.constant 0 : i32
    return %arg0, %c0_i32 : i32, i32
  }
  func.func @transform_1(%arg0: i32) -> (i32, i32) {
    %c0_i32 = arith.constant 0 : i32
    %c0_i32_0 = arith.constant 0 : i32
    %c0_i32_1 = arith.constant 0 : i32
    return %c0_i32, %c0_i32_0 : i32, i32
  }
  func.func @transform_2(%arg0: i32) -> (i32, i32) {
    %c0_i32 = arith.constant 0 : i32
    %c0_i32_0 = arith.constant 0 : i32
    %c0_i32_1 = arith.constant 0 : i32
    return %c0_i32, %c0_i32_0 : i32, i32
  }
  func.func @transform_3(%arg0: i32) -> (i32, i32) {
    %c0_i32 = arith.constant 0 : i32
    %c0_i32_0 = arith.constant 0 : i32
    %c0_i32_1 = arith.constant 0 : i32
    return %c0_i32, %c0_i32_0 : i32, i32
  }
  func.func @transform_4(%arg0: i32) -> (i32, i32) {
    %c0_i32 = arith.constant 0 : i32
    %c0_i32_0 = arith.constant 0 : i32
    %c0_i32_1 = arith.constant 0 : i32
    return %c0_i32, %c0_i32_0 : i32, i32
  }
  func.func @transform_5(%arg0: i32) -> (i32, i32) {
    %c0_i32 = arith.constant 0 : i32
    %c0_i32_0 = arith.constant 0 : i32
    %c0_i32_1 = arith.constant 0 : i32
    return %c0_i32, %c0_i32_0 : i32, i32
  }
  func.func @transform_6(%arg0: i32) -> (i32, i32) {
    %c0_i32 = arith.constant 0 : i32
    %c0_i32_0 = arith.constant 0 : i32
    return %arg0, %c0_i32 : i32, i32
  }
  func.func @transform_7(%arg0: i32) -> (i32, i32) {
    %c0_i32 = arith.constant 0 : i32
    %c0_i32_0 = arith.constant 0 : i32
    %c0_i32_1 = arith.constant 0 : i32
    return %c0_i32, %c0_i32_0 : i32, i32
  }
  func.func @transform_8(%arg0: i32) -> (i32, i32) {
    %c0_i32 = arith.constant 0 : i32
    %c0_i32_0 = arith.constant 0 : i32
    %c0_i32_1 = arith.constant 0 : i32
    return %c0_i32, %c0_i32_0 : i32, i32
  }
}

</mosaic_0001>

<llo_original>
// kernel: rnn_model_forward.3
$region0: #{rnn_model_forward.3}
  #allocation0 [shape = 'u32[]', space=smem, size = 0x4, offset = 0x4, fixed_abs, tag = 'smem constant byte address 0x4 - core index']
  #allocation1 [shape = 'u32[144,128]{1,0:T(1,128)}', space=vmem, size = 0x12000, scoped, tag = 'internal scratch']
  %s0 = inlined_call_operand.vmem [shape: f32[64,128], index: 0, kind: input, shape index: {}]
  %s1 = inlined_call_operand.vmem [shape: f32[128,128], index: 1, kind: input, shape index: {}]
  %s2 = inlined_call_operand.vmem [shape: f32[1,128], index: 2, kind: input, shape index: {}]
  %s3 = inlined_call_operand.vmem [shape: f32[64,128], index: 3, kind: output, shape index: {}]
  %s4 = sld [smem:[#allocation0]]
  $region22: #{rnn_model_forward.3} parent=0
    _
  %s6 = ssub.s32 1, %s4
  %s7 = scalar_select 0, %s6, %s4
  // Predicated region
  $region2: #{rnn_model_forward.3} parent=0 // pred_check
    _
  $region3: #{rnn_model_forward.3} parent=0 // pred_check_branch
    %9 = sbr.rel (0) target = $region5
  $region4: #{rnn_model_forward.3} parent=0 // pred_region
    _
  $region5: #{rnn_model_forward.3} parent=0 // pred_fallthru
    _
  // Predicated region
  $region6: #{rnn_model_forward.3} parent=0 // pred_check
    _
  $region7: #{rnn_model_forward.3} parent=0 // pred_check_branch
    %11 = sbr.rel (0) target = $region9
  $region8: #{rnn_model_forward.3} parent=0 // pred_region
    _
  $region9: #{rnn_model_forward.3} parent=0 // pred_fallthru
    _
  // Predicated region
  $region10: #{rnn_model_forward.3} parent=0 // pred_check
    _
  $region11: #{rnn_model_forward.3} parent=0 // pred_check_branch
    %13 = sbr.rel (0) target = $region13
  $region12: #{rnn_model_forward.3} parent=0 // pred_region
    _
  $region13: #{rnn_model_forward.3} parent=0 // pred_fallthru
    _
  %v14 = vld [vmem:[%s0] sm:$0xff]
  %v15 = vld [vmem:[%s0 + $0x8] sm:$0xff]
  %v16 = vld [vmem:[%s0 + $0x10] sm:$0xff]
  %v17 = vld [vmem:[%s0 + $0x18] sm:$0xff]
  %v18 = vld [vmem:[%s0 + $0x20] sm:$0xff]
  %v19 = vld [vmem:[%s0 + $0x28] sm:$0xff]
  %v20 = vld [vmem:[%s0 + $0x30] sm:$0xff]
  %v21 = vld [vmem:[%s0 + $0x38] sm:$0xff]
  %v22 = vld [vmem:[%s1] sm:$0xff]
  %v23 = vld [vmem:[%s1 + $0x8] sm:$0xff]
  %v24 = vld [vmem:[%s1 + $0x10] sm:$0xff]
  %v25 = vld [vmem:[%s1 + $0x18] sm:$0xff]
  %v26 = vld [vmem:[%s1 + $0x20] sm:$0xff]
  %v27 = vld [vmem:[%s1 + $0x28] sm:$0xff]
  %v28 = vld [vmem:[%s1 + $0x30] sm:$0xff]
  %v29 = vld [vmem:[%s1 + $0x38] sm:$0xff]
  %v30 = vld [vmem:[%s1 + $0x40] sm:$0xff]
  %v31 = vld [vmem:[%s1 + $0x48] sm:$0xff]
  %v32 = vld [vmem:[%s1 + $0x50] sm:$0xff]
  %v33 = vld [vmem:[%s1 + $0x58] sm:$0xff]
  %v34 = vld [vmem:[%s1 + $0x60] sm:$0xff]
  %v35 = vld [vmem:[%s1 + $0x68] sm:$0xff]
  %v36 = vld [vmem:[%s1 + $0x70] sm:$0xff]
  %v37 = vld [vmem:[%s1 + $0x78] sm:$0xff]
  %v38 = vld [vmem:[%s2] sm:$0x1]
  %v40 = vlaneseq
  %v41 = vshrl.u32 %v40, 7
  %v42 = vsub.s32 0, %v41
  %v43 = vrot.slane %v38, %v42
  %45 = vmatprep.subr.mxu0 0.0
  %46 = vmatpush1.msra.mxu0 %v22
  %47 = vmatprep.subr.mxu0 0.0
  %48 = vmatpush1.msra.mxu0 %v23
  %49 = vmatprep.subr.mxu0 0.0
  %50 = vmatpush1.msra.mxu0 %v24
  %51 = vmatprep.subr.mxu0 0.0
  %52 = vmatpush1.msra.mxu0 %v25
  %53 = vmatprep.subr.mxu0 0.0
  %54 = vmatpush1.msra.mxu0 %v26
  %55 = vmatprep.subr.mxu0 0.0
  %56 = vmatpush1.msra.mxu0 %v27
  %57 = vmatprep.subr.mxu0 0.0
  %58 = vmatpush1.msra.mxu0 %v28
  %59 = vmatprep.subr.mxu0 0.0
  %60 = vmatpush1.msra.mxu0 %v29
  %61 = vmatprep.subr.mxu0 0.0
  %62 = vmatpush1.msra.mxu0 %v30
  %63 = vmatprep.subr.mxu0 0.0
  %64 = vmatpush1.msra.mxu0 %v31
  %65 = vmatprep.subr.mxu0 0.0
  %66 = vmatpush1.msra.mxu0 %v32
  %67 = vmatprep.subr.mxu0 0.0
  %68 = vmatpush1.msra.mxu0 %v33
  %69 = vmatprep.subr.mxu0 0.0
  %70 = vmatpush1.msra.mxu0 %v34
  %71 = vmatprep.subr.mxu0 0.0
  %72 = vmatpush1.msra.mxu0 %v35
  %73 = vmatprep.subr.mxu0 0.0
  %74 = vmatpush1.msra.mxu0 %v36
  %75 = vmatprep.subr.mxu0 0.0
  %76 = vmatpush1.msra.mxu0 %v37
  %77 = vmatprep.subr.mxu0 0.0
  %78 = vmatpush1.msra.mxu0 0.0
  %79 = vmatprep.subr.mxu0 0.0
  %80 = vmatpush1.msra.mxu0 0.0
  %81 = vmatprep.subr.mxu0 0.0
  %82 = vmatpush1.msra.mxu0 0.0
  %83 = vmatprep.subr.mxu0 0.0
  %84 = vmatpush1.msra.mxu0 0.0
  %85 = vmatprep.subr.mxu0 0.0
  %86 = vmatpush1.msra.mxu0 0.0
  %87 = vmatprep.subr.mxu0 0.0
  %88 = vmatpush1.msra.mxu0 0.0
  %89 = vmatprep.subr.mxu0 0.0
  %90 = vmatpush1.msra.mxu0 0.0
  %91 = vmatprep.subr.mxu0 0.0
  %92 = vmatpush1.msra.mxu0 0.0
  %93 = vmatprep.subr.mxu0 0.0
  %94 = vmatpush1.msra.mxu0 0.0
  %95 = vmatprep.subr.mxu0 0.0
  %96 = vmatpush1.msra.mxu0 0.0
  %97 = vmatprep.subr.mxu0 0.0
  %98 = vmatpush1.msra.mxu0 0.0
  %99 = vmatprep.subr.mxu0 0.0
  %100 = vmatpush1.msra.mxu0 0.0
  %101 = vmatprep.subr.mxu0 0.0
  %102 = vmatpush1.msra.mxu0 0.0
  %103 = vmatprep.subr.mxu0 0.0
  %104 = vmatpush1.msra.mxu0 0.0
  %105 = vmatprep.subr.mxu0 0.0
  %106 = vmatpush1.msra.mxu0 0.0
  %107 = vmatprep.subr.mxu0 0.0
  %108 = vmatpush1.msra.mxu0 0.0
  %109 = vmatprep.mubr.f32.mxu0 0.0
  %110 = vmatmul.mubr.f32.gmra.mrb[0].mxu0 %v14
  %v111 = vpop.f32.mrb[0].mxu0
  %v112 = vadd.f32 %v43, %v111
  %v113 = vpop.f32.mrb[0].mxu0
  %114 = vmatprep.mubr.f32.mxu0 0.0
  %115 = vmatmul.mubr.f32.gmra.mrb[0].mxu0 %v15
  %v116 = vpop.f32.mrb[0].mxu0
  %v117 = vadd.f32 %v43, %v116
  %v118 = vpop.f32.mrb[0].mxu0
  %119 = vmatprep.mubr.f32.mxu0 0.0
  %120 = vmatmul.mubr.f32.gmra.mrb[0].mxu0 %v16
  %v121 = vpop.f32.mrb[0].mxu0
  %v122 = vadd.f32 %v43, %v121
  %v123 = vpop.f32.mrb[0].mxu0
  %124 = vmatprep.mubr.f32.mxu0 0.0
  %125 = vmatmul.mubr.f32.gmra.mrb[0].mxu0 %v17
  %v126 = vpop.f32.mrb[0].mxu0
  %v127 = vadd.f32 %v43, %v126
  %v128 = vpop.f32.mrb[0].mxu0
  %129 = vmatprep.mubr.f32.mxu0 0.0
  %130 = vmatmul.mubr.f32.gmra.mrb[0].mxu0 %v18
  %v131 = vpop.f32.mrb[0].mxu0
  %v132 = vadd.f32 %v43, %v131
  %v133 = vpop.f32.mrb[0].mxu0
  %134 = vmatprep.mubr.f32.mxu0 0.0
  %135 = vmatmul.mubr.f32.gmra.mrb[0].mxu0 %v19
  %v136 = vpop.f32.mrb[0].mxu0
  %v137 = vadd.f32 %v43, %v136
  %v138 = vpop.f32.mrb[0].mxu0
  %139 = vmatprep.mubr.f32.mxu0 0.0
  %140 = vmatmul.mubr.f32.gmra.mrb[0].mxu0 %v20
  %v141 = vpop.f32.mrb[0].mxu0
  %v142 = vadd.f32 %v43, %v141
  %v143 = vpop.f32.mrb[0].mxu0
  %144 = vmatprep.mubr.f32.mxu0 0.0
  %145 = vmatmul.mubr.f32.gmra.mrb[0].mxu0 %v21
  %v146 = vpop.f32.mrb[0].mxu0
  %v147 = vadd.f32 %v43, %v146
  %v148 = vpop.f32.mrb[0].mxu0
  %149 = vdwg.mxu0
  %150 = vst [vmem:[%s3] sm:$0xff] %v112
  %151 = vst [vmem:[%s3 + $0x8] sm:$0xff] %v117
  %152 = vst [vmem:[%s3 + $0x10] sm:$0xff] %v122
  %153 = vst [vmem:[%s3 + $0x18] sm:$0xff] %v127
  %154 = vst [vmem:[%s3 + $0x20] sm:$0xff] %v132
  %155 = vst [vmem:[%s3 + $0x28] sm:$0xff] %v137
  %156 = vst [vmem:[%s3 + $0x30] sm:$0xff] %v142
  %157 = vst [vmem:[%s3 + $0x38] sm:$0xff] %v147
  // Predicated region
  $region14: #{rnn_model_forward.3} parent=0 // pred_check
    _
  $region15: #{rnn_model_forward.3} parent=0 // pred_check_branch
    %159 = sbr.rel (0) target = $region17
  $region16: #{rnn_model_forward.3} parent=0 // pred_region
    _
  $region17: #{rnn_model_forward.3} parent=0 // pred_fallthru
    _
  // Predicated region
  $region18: #{rnn_model_forward.3} parent=0 // pred_check
    _
  $region19: #{rnn_model_forward.3} parent=0 // pred_check_branch
    %161 = sbr.rel (0) target = $region21
  $region20: #{rnn_model_forward.3} parent=0 // pred_region
    _
  $region21: #{rnn_model_forward.3} parent=0 // pred_fallthru
    _

// kernel: rnn_model_forward.2
$region0: #{rnn_model_forward.2}
  #allocation0 [shape = 'u32[]', space=smem, size = 0x4, offset = 0x4, fixed_abs, tag = 'smem constant byte address 0x4 - core index']
  #allocation1 [shape = 'u32[144,128]{1,0:T(1,128)}', space=vmem, size = 0x12000, scoped, tag = 'internal scratch']
  #allocation2 [shape = 'f32[24,512]{1,0:T(8,128)}', space=vmem, size = 0xc000, scoped, tag = 'scratch operand']
  #allocation3 [shape = 'f32[8,128]{1,0:T(8,128)}', space=vmem, size = 0x1000, scoped, tag = 'scratch operand']
  #allocation4 [shape = 'f32[8,128]{1,0:T(8,128)}', space=vmem, size = 0x1000, scoped, tag = 'scratch operand']
  %s0 = inlined_call_operand.vmem [shape: f32[72,32], index: 0, kind: input, shape index: {}]
  %s1 = inlined_call_operand.vmem [shape: f32[32,512], index: 1, kind: input, shape index: {}]
  %s2 = inlined_call_operand.vmem [shape: f32[1,512], index: 2, kind: input, shape index: {}]
  %s3 = inlined_call_operand.vmem [shape: f32[128,512], index: 3, kind: input, shape index: {}]
  %s4 = inlined_call_operand.vmem [shape: f32[8,128], index: 4, kind: input, shape index: {}]
  %s5 = inlined_call_operand.vmem [shape: f32[8,128], index: 5, kind: input, shape index: {}]
  %s6 = inlined_call_operand.vmem [shape: f32[72,128], index: 6, kind: output, shape index: {0}]
  %s7 = inlined_call_operand.vmem [shape: f32[8,128], index: 7, kind: output, shape index: {1}]
  %s8 = inlined_call_operand.vmem [shape: f32[8,128], index: 8, kind: output, shape index: {2}]
  %9 = xla_tuple %s6, %s7, %s8
  %s10 = sld [smem:[#allocation0]]
  $region81: #{rnn_model_forward.2} parent=0
    _
  %s12 = ssub.s32 1, %s10
  %s13 = scalar_select 0, %s12, %s10
  loop: start=0, step=1, limit=5
  $region2: #{rnn_model_forward.2} parent=0 // loop_pre_header
    _
  $region3: #{rnn_model_forward.2} parent=0 // loop_header
    %s15 = sphi 0, %s19
    %p16 = scmp.ge.s32.totalorder %s15, 5
    %s25 = sphi 0, %s27
    %s28 = sphi 0, %s25
    %s29 = sphi 0, %s28
    %s45 = sphi 0, %s29
    %s49 = sphi 0, %s49
    %s51 = sphi 0, %s49
    %s52 = sphi 0, %s51
    %s66 = sphi 0, %s52
    %s70 = sphi 0, %s70
    %s72 = sphi 0, %s70
    %s73 = sphi 0, %s72
    %s87 = sphi 0, %s73
    %s91 = sphi 0, %s91
    %s93 = sphi 0, %s91
    %s94 = sphi 0, %s93
    %s108 = sphi 0, %s94
    %s112 = sphi 0, %s112
    %s114 = sphi 0, %s112
    %s115 = sphi 0, %s114
    %s129 = sphi 0, %s115
    %s133 = sphi 0, %s133
    %s135 = sphi 0, %s133
    %s136 = sphi 0, %s135
    %s150 = sphi 0, %s136
    %s156 = sphi 0, %s158
    %s159 = sphi 0, %s156
    %s160 = sphi 0, %s159
    %s176 = sphi 0, %s160
    %s180 = sphi 0, %s180
    %s182 = sphi 0, %s180
    %s183 = sphi 0, %s182
    %s197 = sphi 0, %s183
    %s201 = sphi 0, %s201
    %s203 = sphi 0, %s201
    %s204 = sphi 0, %s203
    %s218 = sphi 0, %s204
  $region4: #{rnn_model_forward.2} parent=0 // loop_header_branch
    %18 = sbr.rel (%p16) target = $region8
  $region5: #{rnn_model_forward.2} parent=0 // loop_body
    %s20 = ssub.s32 %s15, 1
    %s21 = ssub.s32 %s15, 2
    %s22 = sadd.s32 %s15, 1
    %s23 = ssub.s32 %s15, %s22
    %p24 = scmp.eq.s32.totalorder %s23, 0
    %s26 = sadd.s32 %s25, 1
    %s27 = scalar_select %p24, %s25, %s26
    %p30 = pneg %p24
    %p31 = scmp.eq.s32.totalorder %s15, 2
    %p32 = por %p30, %p31
    %p33 = scmp.ne.s32.totalorder %s25, %s28
    %p34 = scmp.eq.s32.totalorder %s15, 0
    %p35 = por %p33, %p34
    %p36 = scmp.ne.s32.totalorder %s25, %s28
    %p37 = scmp.eq.s32.totalorder %s20, 2
    %p38 = por %p36, %p37
    %p39 = scmp.ne.s32.totalorder %s28, %s29
    %p40 = scmp.eq.s32.totalorder %s20, 0
    %p41 = por %p39, %p40
    %p42 = scmp.ne.s32.totalorder %s28, %s29
    %p43 = scmp.eq.s32.totalorder %s21, 2
    %p44 = por %p42, %p43
    %p46 = scmp.ne.s32.totalorder %s29, %s45
    %p47 = scmp.eq.s32.totalorder %s21, 0
    %p48 = por %p46, %p47
    %s50 = sadd.s32 %s49, 1
    %p53 = scmp.eq.s32.totalorder %s15, 2
    %p54 = scmp.ne.s32.totalorder %s49, %s51
    %p55 = scmp.eq.s32.totalorder %s15, 0
    %p56 = por %p54, %p55
    %p57 = scmp.ne.s32.totalorder %s49, %s51
    %p58 = scmp.eq.s32.totalorder %s20, 2
    %p59 = por %p57, %p58
    %p60 = scmp.ne.s32.totalorder %s51, %s52
    %p61 = scmp.eq.s32.totalorder %s20, 0
    %p62 = por %p60, %p61
    %p63 = scmp.ne.s32.totalorder %s51, %s52
    %p64 = scmp.eq.s32.totalorder %s21, 2
    %p65 = por %p63, %p64
    %p67 = scmp.ne.s32.totalorder %s52, %s66
    %p68 = scmp.eq.s32.totalorder %s21, 0
    %p69 = por %p67, %p68
    %s71 = sadd.s32 %s70, 1
    %p74 = scmp.eq.s32.totalorder %s15, 2
    %p75 = scmp.ne.s32.totalorder %s70, %s72
    %p76 = scmp.eq.s32.totalorder %s15, 0
    %p77 = por %p75, %p76
    %p78 = scmp.ne.s32.totalorder %s70, %s72
    %p79 = scmp.eq.s32.totalorder %s20, 2
    %p80 = por %p78, %p79
    %p81 = scmp.ne.s32.totalorder %s72, %s73
    %p82 = scmp.eq.s32.totalorder %s20, 0
    %p83 = por %p81, %p82
    %p84 = scmp.ne.s32.totalorder %s72, %s73
    %p85 = scmp.eq.s32.totalorder %s21, 2
    %p86 = por %p84, %p85
    %p88 = scmp.ne.s32.totalorder %s73, %s87
    %p89 = scmp.eq.s32.totalorder %s21, 0
    %p90 = por %p88, %p89
    %s92 = sadd.s32 %s91, 1
    %p95 = scmp.eq.s32.totalorder %s15, 2
    %p96 = scmp.ne.s32.totalorder %s91, %s93
    %p97 = scmp.eq.s32.totalorder %s15, 0
    %p98 = por %p96, %p97
    %p99 = scmp.ne.s32.totalorder %s91, %s93
    %p100 = scmp.eq.s32.totalorder %s20, 2
    %p101 = por %p99, %p100
    %p102 = scmp.ne.s32.totalorder %s93, %s94
    %p103 = scmp.eq.s32.totalorder %s20, 0
    %p104 = por %p102, %p103
    %p105 = scmp.ne.s32.totalorder %s93, %s94
    %p106 = scmp.eq.s32.totalorder %s21, 2
    %p107 = por %p105, %p106
    %p109 = scmp.ne.s32.totalorder %s94, %s108
    %p110 = scmp.eq.s32.totalorder %s21, 0
    %p111 = por %p109, %p110
    %s113 = sadd.s32 %s112, 1
    %p116 = scmp.eq.s32.totalorder %s15, 2
    %p117 = scmp.ne.s32.totalorder %s112, %s114
    %p118 = scmp.eq.s32.totalorder %s15, 0
    %p119 = por %p117, %p118
    %p120 = scmp.ne.s32.totalorder %s112, %s114
    %p121 = scmp.eq.s32.totalorder %s20, 2
    %p122 = por %p120, %p121
    %p123 = scmp.ne.s32.totalorder %s114, %s115
    %p124 = scmp.eq.s32.totalorder %s20, 0
    %p125 = por %p123, %p124
    %p126 = scmp.ne.s32.totalorder %s114, %s115
    %p127 = scmp.eq.s32.totalorder %s21, 2
    %p128 = por %p126, %p127
    %p130 = scmp.ne.s32.totalorder %s115, %s129
    %p131 = scmp.eq.s32.totalorder %s21, 0
    %p132 = por %p130, %p131
    %s134 = sadd.s32 %s133, 1
    %p137 = scmp.eq.s32.totalorder %s15, 2
    %p138 = scmp.ne.s32.totalorder %s133, %s135
    %p139 = scmp.eq.s32.totalorder %s15, 0
    %p140 = por %p138, %p139
    %p141 = scmp.ne.s32.totalorder %s133, %s135
    %p142 = scmp.eq.s32.totalorder %s20, 2
    %p143 = por %p141, %p142
    %p144 = scmp.ne.s32.totalorder %s135, %s136
    %p145 = scmp.eq.s32.totalorder %s20, 0
    %p146 = por %p144, %p145
    %p147 = scmp.ne.s32.totalorder %s135, %s136
    %p148 = scmp.eq.s32.totalorder %s21, 2
    %p149 = por %p147, %p148
    %p151 = scmp.ne.s32.totalorder %s136, %s150
    %p152 = scmp.eq.s32.totalorder %s21, 0
    %p153 = por %p151, %p152
    %s154 = ssub.s32 %s15, %s22
    %p155 = scmp.eq.s32.totalorder %s154, 0
    %s157 = sadd.s32 %s156, 1
    %s158 = scalar_select %p155, %s156, %s157
    %p161 = pneg %p155
    %p162 = scmp.eq.s32.totalorder %s15, 2
    %p163 = por %p161, %p162
    %p164 = scmp.ne.s32.totalorder %s156, %s159
    %p165 = scmp.eq.s32.totalorder %s15, 0
    %p166 = por %p164, %p165
    %p167 = scmp.ne.s32.totalorder %s156, %s159
    %p168 = scmp.eq.s32.totalorder %s20, 2
    %p169 = por %p167, %p168
    %p170 = scmp.ne.s32.totalorder %s159, %s160
    %p171 = scmp.eq.s32.totalorder %s20, 0
    %p172 = por %p170, %p171
    %p173 = scmp.ne.s32.totalorder %s159, %s160
    %p174 = scmp.eq.s32.totalorder %s21, 2
    %p175 = por %p173, %p174
    %p177 = scmp.ne.s32.totalorder %s160, %s176
    %p178 = scmp.eq.s32.totalorder %s21, 0
    %p179 = por %p177, %p178
    %s181 = sadd.s32 %s180, 1
    %p184 = scmp.eq.s32.totalorder %s15, 2
    %p185 = scmp.ne.s32.totalorder %s180, %s182
    %p186 = scmp.eq.s32.totalorder %s15, 0
    %p187 = por %p185, %p186
    %p188 = scmp.ne.s32.totalorder %s180, %s182
    %p189 = scmp.eq.s32.totalorder %s20, 2
    %p190 = por %p188, %p189
    %p191 = scmp.ne.s32.totalorder %s182, %s183
    %p192 = scmp.eq.s32.totalorder %s20, 0
    %p193 = por %p191, %p192
    %p194 = scmp.ne.s32.totalorder %s182, %s183
    %p195 = scmp.eq.s32.totalorder %s21, 2
    %p196 = por %p194, %p195
    %p198 = scmp.ne.s32.totalorder %s183, %s197
    %p199 = scmp.eq.s32.totalorder %s21, 0
    %p200 = por %p198, %p199
    %s202 = sadd.s32 %s201, 1
    %p205 = scmp.eq.s32.totalorder %s15, 2
    %p206 = scmp.ne.s32.totalorder %s201, %s203
    %p207 = scmp.eq.s32.totalorder %s15, 0
    %p208 = por %p206, %p207
    %p209 = scmp.ne.s32.totalorder %s201, %s203
    %p210 = scmp.eq.s32.totalorder %s20, 2
    %p211 = por %p209, %p210
    %p212 = scmp.ne.s32.totalorder %s203, %s204
    %p213 = scmp.eq.s32.totalorder %s20, 0
    %p214 = por %p212, %p213
    %p215 = scmp.ne.s32.totalorder %s203, %s204
    %p216 = scmp.eq.s32.totalorder %s21, 2
    %p217 = por %p215, %p216
    %p219 = scmp.ne.s32.totalorder %s204, %s218
    %p220 = scmp.eq.s32.totalorder %s21, 0
    %p221 = por %p219, %p220
    %p222 = scmp.le.s32.totalorder 1, %s15
    %p223 = scmp.lt.s32.totalorder %s15, 4
    %p224 = pnand %p222, %p223
    %p225 = pneg %p224
    // Predicated region
    $region9: #{rnn_model_forward.2} parent=5 // pred_check
      _
    $region10: #{rnn_model_forward.2} parent=5 // pred_check_branch
      %227 = sbr.rel (%p224) target = $region12
    $region11: #{rnn_model_forward.2} parent=5 // pred_region
      %s228 = ssub.s32 %s15, 1
      // Predicated region
      $region13: #{rnn_model_forward.2} parent=11 // pred_check
        %p229 = pneg %p62
      $region14: #{rnn_model_forward.2} parent=11 // pred_check_branch
        %231 = sbr.rel (%p229) target = $region16
      $region15: #{rnn_model_forward.2} parent=11 // pred_region
        _
      $region16: #{rnn_model_forward.2} parent=11 // pred_fallthru
        _
      // Predicated region
      $region17: #{rnn_model_forward.2} parent=11 // pred_check
        %p232 = pneg %p83
      $region18: #{rnn_model_forward.2} parent=11 // pred_check_branch
        %234 = sbr.rel (%p232) target = $region20
      $region19: #{rnn_model_forward.2} parent=11 // pred_region
        _
      $region20: #{rnn_model_forward.2} parent=11 // pred_fallthru
        _
      // Predicated region
      $region21: #{rnn_model_forward.2} parent=11 // pred_check
        %p235 = pneg %p104
      $region22: #{rnn_model_forward.2} parent=11 // pred_check_branch
        %237 = sbr.rel (%p235) target = $region24
      $region23: #{rnn_model_forward.2} parent=11 // pred_region
        _
      $region24: #{rnn_model_forward.2} parent=11 // pred_fallthru
        _
      // Predicated region
      $region25: #{rnn_model_forward.2} parent=11 // pred_check
        %p238 = pneg %p125
      $region26: #{rnn_model_forward.2} parent=11 // pred_check_branch
        %240 = sbr.rel (%p238) target = $region28
      $region27: #{rnn_model_forward.2} parent=11 // pred_region
        _
      $region28: #{rnn_model_forward.2} parent=11 // pred_fallthru
        _
      // Predicated region
      $region29: #{rnn_model_forward.2} parent=11 // pred_check
        %p241 = pneg %p146
      $region30: #{rnn_model_forward.2} parent=11 // pred_check_branch
        %243 = sbr.rel (%p241) target = $region32
      $region31: #{rnn_model_forward.2} parent=11 // pred_region
        _
      $region32: #{rnn_model_forward.2} parent=11 // pred_fallthru
        _
    $region12: #{rnn_model_forward.2} parent=5 // pred_fallthru
      _
    %p244 = scmp.lt.s32.totalorder %s15, 3
    // Predicated region
    $region33: #{rnn_model_forward.2} parent=5 // pred_check
      %p245 = pneg %p244
    $region34: #{rnn_model_forward.2} parent=5 // pred_check_branch
      %247 = sbr.rel (%p245) target = $region36
    $region35: #{rnn_model_forward.2} parent=5 // pred_region
      // Predicated region
      $region37: #{rnn_model_forward.2} parent=35 // pred_check
        %p248 = pneg %p35
      $region38: #{rnn_model_forward.2} parent=35 // pred_check_branch
        %250 = sbr.rel (%p248) target = $region40
      $region39: #{rnn_model_forward.2} parent=35 // pred_region
        %s251 = smul.u32 3, %s15
        %p252 = scmp.lt.s32.totalorder %s251, 8
        %s253 = scalar_select %p252, %s251, 8
        %s254 = smul.addr %s253, 8
        %s255 = scalar_lea.vmem %s0, %s254
        %s256 = smul.u32 3, %s15
      $region40: #{rnn_model_forward.2} parent=35 // pred_fallthru
        _
    $region36: #{rnn_model_forward.2} parent=5 // pred_fallthru
      _
    %p257 = scmp.le.s32.totalorder 1, %s15
    %p258 = scmp.lt.s32.totalorder %s15, 4
    %p259 = pnand %p257, %p258
    %p260 = pneg %p259
    // Predicated region
    $region41: #{rnn_model_forward.2} parent=5 // pred_check
      _
    $region42: #{rnn_model_forward.2} parent=5 // pred_check_branch
      %262 = sbr.rel (%p259) target = $region44
    $region43: #{rnn_model_forward.2} parent=5 // pred_region
      %s263 = ssub.s32 %s15, 1
      %s264 = smul.u32 3, %s20
      %p265 = scmp.lt.s32.totalorder %s264, 8
      %s266 = scalar_select %p265, %s264, 8
      %s267 = smul.addr %s266, 8
      %s268 = scalar_lea.vmem %s0, %s267
      %p269 = pneg %p41
      %p270 = pneg %p38
      %p271 = pneg %p62
      %p272 = pneg %p59
      %p273 = pneg %p83
      %p274 = pneg %p80
      %p275 = pneg %p104
      %p276 = pneg %p101
      %p277 = pneg %p125
      %p278 = pneg %p122
      %p279 = pneg %p146
      %p280 = pneg %p143
      %p281 = pneg %p172
      %p282 = pneg %p169
      %s283 = smul.u32 3, %s20
      %p284 = scmp.lt.s32.totalorder %s283, 8
      %s285 = scalar_select %p284, %s283, 8
      %s286 = smul.addr %s285, 8
      %s287 = scalar_lea.vmem %s6, %s286
      %p288 = pneg %p193
      %p289 = pneg %p190
      %p290 = pneg %p214
      %p291 = pneg %p211
      %s292 = smul.u32 3, %s20
      %p293 = scmp.lt.s32.totalorder %s292, 8
      %s294 = scalar_select %p293, %s292, 8
      %s295 = smul.addr %s294, 8
      %s296 = scalar_lea.vmem %s0, %s295
      %s297 = smul.u32 3, %s20
      %s298 = smul.u32 3, %s20
      %p299 = scmp.lt.s32.totalorder %s298, 8
      %s300 = scalar_select %p299, %s298, 8
      %s301 = smul.addr %s300, 8
      %s302 = scalar_lea.vmem %s6, %s301
      %s303 = smul.u32 3, %s20
      %p304 = scmp.eq.s32.totalorder %s20, 0
      // Predicated region
      $region45: #{rnn_model_forward.2} parent=43 // pred_check
        %p305 = pneg %p304
      $region46: #{rnn_model_forward.2} parent=43 // pred_check_branch
        %307 = sbr.rel (%p305) target = $region48
      $region47: #{rnn_model_forward.2} parent=43 // pred_region
        %v308 = vld [vmem:[%s4] sm:$0xff]
        %309 = vst [vmem:[#allocation3] sm:$0xff] %v308
        %v310 = vld [vmem:[%s5] sm:$0xff]
        %311 = vst [vmem:[#allocation4] sm:$0xff] %v310
      $region48: #{rnn_model_forward.2} parent=43 // pred_fallthru
        _
      %v312 = vld [vmem:[%s296] sm:$0xff]
      %v313 = vld [vmem:[%s296 + $0x8] sm:$0xff]
      %v314 = vld [vmem:[%s296 + $0x10] sm:$0xff]
      %v315 = vld [vmem:[%s1] sm:$0xff]
      %v316 = vld [vmem:[%s1 + $0x8] sm:$0xff]
      %v317 = vld [vmem:[%s1 + $0x10] sm:$0xff]
      %v318 = vld [vmem:[%s1 + $0x18] sm:$0xff]
      %v319 = vld [vmem:[%s1 + $0x20] sm:$0xff]
      %v320 = vld [vmem:[%s1 + $0x28] sm:$0xff]
      %v321 = vld [vmem:[%s1 + $0x30] sm:$0xff]
      %v322 = vld [vmem:[%s1 + $0x38] sm:$0xff]
      %v323 = vld [vmem:[%s1 + $0x40] sm:$0xff]
      %v324 = vld [vmem:[%s1 + $0x48] sm:$0xff]
      %v325 = vld [vmem:[%s1 + $0x50] sm:$0xff]
      %v326 = vld [vmem:[%s1 + $0x58] sm:$0xff]
      %v327 = vld [vmem:[%s1 + $0x60] sm:$0xff]
      %v328 = vld [vmem:[%s1 + $0x68] sm:$0xff]
      %v329 = vld [vmem:[%s1 + $0x70] sm:$0xff]
      %v330 = vld [vmem:[%s1 + $0x78] sm:$0xff]
      %v331 = vld [vmem:[%s2] sm:$0xf]
      %v333 = vlaneseq
      %v334 = vshrl.u32 %v333, 7
      %v335 = vsub.s32 0, %v334
      %v336 = vrot.slane %v331, %v335
      %v337 = vlaneseq
      %v338 = vshrl.u32 %v337, 7
      %v339 = vsub.s32 1, %v338
      %v340 = vrot.slane %v331, %v339
      %v341 = vlaneseq
      %v342 = vshrl.u32 %v341, 7
      %v343 = vsub.s32 2, %v342
      %v344 = vrot.slane %v331, %v343
      %v345 = vlaneseq
      %v346 = vshrl.u32 %v345, 7
      %v347 = vsub.s32 3, %v346
      %v348 = vrot.slane %v331, %v347
      %vm353 = vcmask 261120
      %v355 = vsel %vm353, %v312, 0
      %v358 = vsel %vm353, %v313, 0
      %v361 = vsel %vm353, %v314, 0
      %363 = vmatprep.subr.mxu0 %v316
      %364 = vmatpush1.msra.mxu0 %v315
      %365 = vmatprep.subr.mxu0 %v320
      %366 = vmatpush1.msra.mxu0 %v319
      %367 = vmatprep.subr.mxu0 %v324
      %368 = vmatpush1.msra.mxu0 %v323
      %369 = vmatprep.subr.mxu0 %v328
      %370 = vmatpush1.msra.mxu0 %v327
      %371 = vmatprep.subr.mxu0 0.0
      %372 = vmatpush1.msra.mxu0 0.0
      %373 = vmatprep.subr.mxu0 0.0
      %374 = vmatpush1.msra.mxu0 0.0
      %375 = vmatprep.subr.mxu0 0.0
      %376 = vmatpush1.msra.mxu0 0.0
      %377 = vmatprep.subr.mxu0 0.0
      %378 = vmatpush1.msra.mxu0 0.0
      %379 = vmatprep.subr.mxu0 0.0
      %380 = vmatpush1.msra.mxu0 0.0
      %381 = vmatprep.subr.mxu0 0.0
      %382 = vmatpush1.msra.mxu0 0.0
      %383 = vmatprep.subr.mxu0 0.0
      %384 = vmatpush1.msra.mxu0 0.0
      %385 = vmatprep.subr.mxu0 0.0
      %386 = vmatpush1.msra.mxu0 0.0
      %387 = vmatprep.subr.mxu0 0.0
      %388 = vmatpush1.msra.mxu0 0.0
      %389 = vmatprep.subr.mxu0 0.0
      %390 = vmatpush1.msra.mxu0 0.0
      %391 = vmatprep.subr.mxu0 0.0
      %392 = vmatpush1.msra.mxu0 0.0
      %393 = vmatprep.subr.mxu0 0.0
      %394 = vmatpush1.msra.mxu0 0.0
      %395 = vmatprep.subr.mxu0 0.0
      %396 = vmatpush1.msra.mxu0 0.0
      %397 = vmatprep.subr.mxu0 0.0
      %398 = vmatpush1.msra.mxu0 0.0
      %399 = vmatprep.subr.mxu0 0.0
      %400 = vmatpush1.msra.mxu0 0.0
      %401 = vmatprep.subr.mxu0 0.0
      %402 = vmatpush1.msra.mxu0 0.0
      %403 = vmatprep.subr.mxu0 0.0
      %404 = vmatpush1.msra.mxu0 0.0
      %405 = vmatprep.subr.mxu0 0.0
      %406 = vmatpush1.msra.mxu0 0.0
      %407 = vmatprep.subr.mxu0 0.0
      %408 = vmatpush1.msra.mxu0 0.0
      %409 = vmatprep.subr.mxu0 0.0
      %410 = vmatpush1.msra.mxu0 0.0
      %411 = vmatprep.subr.mxu0 0.0
      %412 = vmatpush1.msra.mxu0 0.0
      %413 = vmatprep.subr.mxu0 0.0
      %414 = vmatpush1.msra.mxu0 0.0
      %415 = vmatprep.subr.mxu0 0.0
      %416 = vmatpush1.msra.mxu0 0.0
      %417 = vmatprep.subr.mxu0 0.0
      %418 = vmatpush1.msra.mxu0 0.0
      %419 = vmatprep.subr.mxu0 0.0
      %420 = vmatpush1.msra.mxu0 0.0
      %421 = vmatprep.subr.mxu0 0.0
      %422 = vmatpush1.msra.mxu0 0.0
      %423 = vmatprep.subr.mxu0 0.0
      %424 = vmatpush1.msra.mxu0 0.0
      %425 = vmatprep.subr.mxu0 0.0
      %426 = vmatpush1.msra.mxu0 0.0
      %427 = vmatprep.mubr.f32.mxu0 0.0
      %428 = vmatmul.mubr.f32.gmra.mrb[0].mxu0 %v355
      %v429 = vpop.f32.mrb[0].mxu0
      %v430 = vadd.f32 %v336, %v429
      %v431 = vpop.f32.mrb[0].mxu0
      %v432 = vadd.f32 %v340, %v431
      %433 = vmatprep.mubr.f32.mxu0 0.0
      %434 = vmatmul.mubr.f32.gmra.mrb[0].mxu0 %v358
      %v435 = vpop.f32.mrb[0].mxu0
      %v436 = vadd.f32 %v336, %v435
      %v437 = vpop.f32.mrb[0].mxu0
      %v438 = vadd.f32 %v340, %v437
      %439 = vmatprep.mubr.f32.mxu0 0.0
      %440 = vmatmul.mubr.f32.gmra.mrb[0].mxu0 %v361
      %v441 = vpop.f32.mrb[0].mxu0
      %v442 = vadd.f32 %v336, %v441
      %v443 = vpop.f32.mrb[0].mxu0
      %v444 = vadd.f32 %v340, %v443
      %445 = vdwg.mxu0
      %446 = vmatprep.subr.mxu0 %v318
      %447 = vmatpush1.msra.mxu0 %v317
      %448 = vmatprep.subr.mxu0 %v322
      %449 = vmatpush1.msra.mxu0 %v321
      %450 = vmatprep.subr.mxu0 %v326
      %451 = vmatpush1.msra.mxu0 %v325
      %452 = vmatprep.subr.mxu0 %v330
      %453 = vmatpush1.msra.mxu0 %v329
      %454 = vmatprep.subr.mxu0 0.0
      %455 = vmatpush1.msra.mxu0 0.0
      %456 = vmatprep.subr.mxu0 0.0
      %457 = vmatpush1.msra.mxu0 0.0
      %458 = vmatprep.subr.mxu0 0.0
      %459 = vmatpush1.msra.mxu0 0.0
      %460 = vmatprep.subr.mxu0 0.0
      %461 = vmatpush1.msra.mxu0 0.0
      %462 = vmatprep.subr.mxu0 0.0
      %463 = vmatpush1.msra.mxu0 0.0
      %464 = vmatprep.subr.mxu0 0.0
      %465 = vmatpush1.msra.mxu0 0.0
      %466 = vmatprep.subr.mxu0 0.0
      %467 = vmatpush1.msra.mxu0 0.0
      %468 = vmatprep.subr.mxu0 0.0
      %469 = vmatpush1.msra.mxu0 0.0
      %470 = vmatprep.subr.mxu0 0.0
      %471 = vmatpush1.msra.mxu0 0.0
      %472 = vmatprep.subr.mxu0 0.0
      %473 = vmatpush1.msra.mxu0 0.0
      %474 = vmatprep.subr.mxu0 0.0
      %475 = vmatpush1.msra.mxu0 0.0
      %476 = vmatprep.subr.mxu0 0.0
      %477 = vmatpush1.msra.mxu0 0.0
      %478 = vmatprep.subr.mxu0 0.0
      %479 = vmatpush1.msra.mxu0 0.0
      %480 = vmatprep.subr.mxu0 0.0
      %481 = vmatpush1.msra.mxu0 0.0
      %482 = vmatprep.subr.mxu0 0.0
      %483 = vmatpush1.msra.mxu0 0.0
      %484 = vmatprep.subr.mxu0 0.0
      %485 = vmatpush1.msra.mxu0 0.0
      %486 = vmatprep.subr.mxu0 0.0
      %487 = vmatpush1.msra.mxu0 0.0
      %488 = vmatprep.subr.mxu0 0.0
      %489 = vmatpush1.msra.mxu0 0.0
      %490 = vmatprep.subr.mxu0 0.0
      %491 = vmatpush1.msra.mxu0 0.0
      %492 = vmatprep.subr.mxu0 0.0
      %493 = vmatpush1.msra.mxu0 0.0
      %494 = vmatprep.subr.mxu0 0.0
      %495 = vmatpush1.msra.mxu0 0.0
      %496 = vmatprep.subr.mxu0 0.0
      %497 = vmatpush1.msra.mxu0 0.0
      %498 = vmatprep.subr.mxu0 0.0
      %499 = vmatpush1.msra.mxu0 0.0
      %500 = vmatprep.subr.mxu0 0.0
      %501 = vmatpush1.msra.mxu0 0.0
      %502 = vmatprep.subr.mxu0 0.0
      %503 = vmatpush1.msra.mxu0 0.0
      %504 = vmatprep.subr.mxu0 0.0
      %505 = vmatpush1.msra.mxu0 0.0
      %506 = vmatprep.subr.mxu0 0.0
      %507 = vmatpush1.msra.mxu0 0.0
      %508 = vmatprep.subr.mxu0 0.0
      %509 = vmatpush1.msra.mxu0 0.0
      %510 = vmatprep.mubr.f32.mxu0 0.0
      %511 = vmatmul.mubr.f32.gmra.mrb[0].mxu0 %v355
      %v512 = vpop.f32.mrb[0].mxu0
      %v513 = vadd.f32 %v344, %v512
      %v514 = vpop.f32.mrb[0].mxu0
      %v515 = vadd.f32 %v348, %v514
      %516 = vmatprep.mubr.f32.mxu0 0.0
      %517 = vmatmul.mubr.f32.gmra.mrb[0].mxu0 %v358
      %v518 = vpop.f32.mrb[0].mxu0
      %v519 = vadd.f32 %v344, %v518
      %v520 = vpop.f32.mrb[0].mxu0
      %v521 = vadd.f32 %v348, %v520
      %522 = vmatprep.mubr.f32.mxu0 0.0
      %523 = vmatmul.mubr.f32.gmra.mrb[0].mxu0 %v361
      %v524 = vpop.f32.mrb[0].mxu0
      %v525 = vadd.f32 %v344, %v524
      %v526 = vpop.f32.mrb[0].mxu0
      %v527 = vadd.f32 %v348, %v526
      %528 = vdwg.mxu0
      %529 = vst [vmem:[#allocation2] sm:$0xff] %v430
      %530 = vst [vmem:[#allocation2 + $0x8] sm:$0xff] %v432
      %531 = vst [vmem:[#allocation2 + $0x10] sm:$0xff] %v513
      %532 = vst [vmem:[#allocation2 + $0x18] sm:$0xff] %v515
      %533 = vst [vmem:[#allocation2 + $0x20] sm:$0xff] %v436
      %534 = vst [vmem:[#allocation2 + $0x28] sm:$0xff] %v438
      %535 = vst [vmem:[#allocation2 + $0x30] sm:$0xff] %v519
      %536 = vst [vmem:[#allocation2 + $0x38] sm:$0xff] %v521
      %537 = vst [vmem:[#allocation2 + $0x40] sm:$0xff] %v442
      %538 = vst [vmem:[#allocation2 + $0x48] sm:$0xff] %v444
      %539 = vst [vmem:[#allocation2 + $0x50] sm:$0xff] %v525
      %540 = vst [vmem:[#allocation2 + $0x58] sm:$0xff] %v527
      %v541 = vld [vmem:[#allocation3] sm:$0xff]
      %v542 = vld [vmem:[#allocation4] sm:$0xff]
      %s543 = smul.u32 0, 4
      %s544 = smul.addr %s543, 8
      %s545 = scalar_lea.vmem [#allocation2], %s544
      %v546 = vld [vmem:[%s545] sm:$0xff]
      %v547 = vld [vmem:[%s545 + $0x8] sm:$0xff]
      %v548 = vld [vmem:[%s545 + $0x10] sm:$0xff]
      %v549 = vld [vmem:[%s545 + $0x18] sm:$0xff]
      %v550 = vld [vmem:[%s3] sm:$0xff]
      %v551 = vld [vmem:[%s3 + $0x8] sm:$0xff]
      %v552 = vld [vmem:[%s3 + $0x10] sm:$0xff]
      %v553 = vld [vmem:[%s3 + $0x18] sm:$0xff]
      %v554 = vld [vmem:[%s3 + $0x20] sm:$0xff]
      %v555 = vld [vmem:[%s3 + $0x28] sm:$0xff]
      %v556 = vld [vmem:[%s3 + $0x30] sm:$0xff]
      %v557 = vld [vmem:[%s3 + $0x38] sm:$0xff]
      %v558 = vld [vmem:[%s3 + $0x40] sm:$0xff]
      %v559 = vld [vmem:[%s3 + $0x48] sm:$0xff]
      %v560 = vld [vmem:[%s3 + $0x50] sm:$0xff]
      %v561 = vld [vmem:[%s3 + $0x58] sm:$0xff]
      %v562 = vld [vmem:[%s3 + $0x60] sm:$0xff]
      %v563 = vld [vmem:[%s3 + $0x68] sm:$0xff]
      %v564 = vld [vmem:[%s3 + $0x70] sm:$0xff]
      %v565 = vld [vmem:[%s3 + $0x78] sm:$0xff]
      %v566 = vld [vmem:[%s3 + $0x80] sm:$0xff]
      %v567 = vld [vmem:[%s3 + $0x88] sm:$0xff]
      %v568 = vld [vmem:[%s3 + $0x90] sm:$0xff]
      %v569 = vld [vmem:[%s3 + $0x98] sm:$0xff]
      %v570 = vld [vmem:[%s3 + $0xa0] sm:$0xff]
      %v571 = vld [vmem:[%s3 + $0xa8] sm:$0xff]
      %v572 = vld [vmem:[%s3 + $0xb0] sm:$0xff]
      %v573 = vld [vmem:[%s3 + $0xb8] sm:$0xff]
      %v574 = vld [vmem:[%s3 + $0xc0] sm:$0xff]
      %v575 = vld [vmem:[%s3 + $0xc8] sm:$0xff]
      %v576 = vld [vmem:[%s3 + $0xd0] sm:$0xff]
      %v577 = vld [vmem:[%s3 + $0xd8] sm:$0xff]
      %v578 = vld [vmem:[%s3 + $0xe0] sm:$0xff]
      %v579 = vld [vmem:[%s3 + $0xe8] sm:$0xff]
      %v580 = vld [vmem:[%s3 + $0xf0] sm:$0xff]
      %v581 = vld [vmem:[%s3 + $0xf8] sm:$0xff]
      %v582 = vld [vmem:[%s3 + $0x100] sm:$0xff]
      %v583 = vld [vmem:[%s3 + $0x108] sm:$0xff]
      %v584 = vld [vmem:[%s3 + $0x110] sm:$0xff]
      %v585 = vld [vmem:[%s3 + $0x118] sm:$0xff]
      %v586 = vld [vmem:[%s3 + $0x120] sm:$0xff]
      %v587 = vld [vmem:[%s3 + $0x128] sm:$0xff]
      %v588 = vld [vmem:[%s3 + $0x130] sm:$0xff]
      %v589 = vld [vmem:[%s3 + $0x138] sm:$0xff]
      %v590 = vld [vmem:[%s3 + $0x140] sm:$0xff]
      %v591 = vld [vmem:[%s3 + $0x148] sm:$0xff]
      %v592 = vld [vmem:[%s3 + $0x150] sm:$0xff]
      %v593 = vld [vmem:[%s3 + $0x158] sm:$0xff]
      %v594 = vld [vmem:[%s3 + $0x160] sm:$0xff]
      %v595 = vld [vmem:[%s3 + $0x168] sm:$0xff]
      %v596 = vld [vmem:[%s3 + $0x170] sm:$0xff]
      %v597 = vld [vmem:[%s3 + $0x178] sm:$0xff]
      %v598 = vld [vmem:[%s3 + $0x180] sm:$0xff]
      %v599 = vld [vmem:[%s3 + $0x188] sm:$0xff]
      %v600 = vld [vmem:[%s3 + $0x190] sm:$0xff]
      %v601 = vld [vmem:[%s3 + $0x198] sm:$0xff]
      %v602 = vld [vmem:[%s3 + $0x1a0] sm:$0xff]
      %v603 = vld [vmem:[%s3 + $0x1a8] sm:$0xff]
      %v604 = vld [vmem:[%s3 + $0x1b0] sm:$0xff]
      %v605 = vld [vmem:[%s3 + $0x1b8] sm:$0xff]
      %v606 = vld [vmem:[%s3 + $0x1c0] sm:$0xff]
      %v607 = vld [vmem:[%s3 + $0x1c8] sm:$0xff]
      %v608 = vld [vmem:[%s3 + $0x1d0] sm:$0xff]
      %v609 = vld [vmem:[%s3 + $0x1d8] sm:$0xff]
      %v610 = vld [vmem:[%s3 + $0x1e0] sm:$0xff]
      %v611 = vld [vmem:[%s3 + $0x1e8] sm:$0xff]
      %v612 = vld [vmem:[%s3 + $0x1f0] sm:$0xff]
      %v613 = vld [vmem:[%s3 + $0x1f8] sm:$0xff]
      %614 = vmatprep.subr.mxu0 %v551
      %615 = vmatpush1.msra.mxu0 %v550
      %616 = vmatprep.subr.mxu0 %v555
      %617 = vmatpush1.msra.mxu0 %v554
      %618 = vmatprep.subr.mxu0 %v559
      %619 = vmatpush1.msra.mxu0 %v558
      %620 = vmatprep.subr.mxu0 %v563
      %621 = vmatpush1.msra.mxu0 %v562
      %622 = vmatprep.subr.mxu0 %v567
      %623 = vmatpush1.msra.mxu0 %v566
      %624 = vmatprep.subr.mxu0 %v571
      %625 = vmatpush1.msra.mxu0 %v570
      %626 = vmatprep.subr.mxu0 %v575
      %627 = vmatpush1.msra.mxu0 %v574
      %628 = vmatprep.subr.mxu0 %v579
      %629 = vmatpush1.msra.mxu0 %v578
      %630 = vmatprep.subr.mxu0 %v583
      %631 = vmatpush1.msra.mxu0 %v582
      %632 = vmatprep.subr.mxu0 %v587
      %633 = vmatpush1.msra.mxu0 %v586
      %634 = vmatprep.subr.mxu0 %v591
      %635 = vmatpush1.msra.mxu0 %v590
      %636 = vmatprep.subr.mxu0 %v595
      %637 = vmatpush1.msra.mxu0 %v594
      %638 = vmatprep.subr.mxu0 %v599
      %639 = vmatpush1.msra.mxu0 %v598
      %640 = vmatprep.subr.mxu0 %v603
      %641 = vmatpush1.msra.mxu0 %v602
      %642 = vmatprep.subr.mxu0 %v607
      %643 = vmatpush1.msra.mxu0 %v606
      %644 = vmatprep.subr.mxu0 %v611
      %645 = vmatpush1.msra.mxu0 %v610
      %646 = vmatprep.subr.mxu0 0.0
      %647 = vmatpush1.msra.mxu0 0.0
      %648 = vmatprep.subr.mxu0 0.0
      %649 = vmatpush1.msra.mxu0 0.0
      %650 = vmatprep.subr.mxu0 0.0
      %651 = vmatpush1.msra.mxu0 0.0
      %652 = vmatprep.subr.mxu0 0.0
      %653 = vmatpush1.msra.mxu0 0.0
      %654 = vmatprep.subr.mxu0 0.0
      %655 = vmatpush1.msra.mxu0 0.0
      %656 = vmatprep.subr.mxu0 0.0
      %657 = vmatpush1.msra.mxu0 0.0
      %658 = vmatprep.subr.mxu0 0.0
      %659 = vmatpush1.msra.mxu0 0.0
      %660 = vmatprep.subr.mxu0 0.0
      %661 = vmatpush1.msra.mxu0 0.0
      %662 = vmatprep.subr.mxu0 0.0
      %663 = vmatpush1.msra.mxu0 0.0
      %664 = vmatprep.subr.mxu0 0.0
      %665 = vmatpush1.msra.mxu0 0.0
      %666 = vmatprep.subr.mxu0 0.0
      %667 = vmatpush1.msra.mxu0 0.0
      %668 = vmatprep.subr.mxu0 0.0
      %669 = vmatpush1.msra.mxu0 0.0
      %670 = vmatprep.subr.mxu0 0.0
      %671 = vmatpush1.msra.mxu0 0.0
      %672 = vmatprep.subr.mxu0 0.0
      %673 = vmatpush1.msra.mxu0 0.0
      %674 = vmatprep.subr.mxu0 0.0
      %675 = vmatpush1.msra.mxu0 0.0
      %676 = vmatprep.subr.mxu0 0.0
      %677 = vmatpush1.msra.mxu0 0.0
      %678 = vmatprep.mubr.f32.mxu0 0.0
      %679 = vmatmul.mubr.f32.gmra.mrb[0].mxu0 %v541
      %v680 = vpop.f32.mrb[0].mxu0
      %v681 = vadd.f32 0.0, %v680
      %v682 = vpop.f32.mrb[0].mxu0
      %v683 = vadd.f32 0.0, %v682
      %684 = vdwg.mxu0
      %685 = vmatprep.subr.mxu0 %v553
      %686 = vmatpush1.msra.mxu0 %v552
      %687 = vmatprep.subr.mxu0 %v557
      %688 = vmatpush1.msra.mxu0 %v556
      %689 = vmatprep.subr.mxu0 %v561
      %690 = vmatpush1.msra.mxu0 %v560
      %691 = vmatprep.subr.mxu0 %v565
      %692 = vmatpush1.msra.mxu0 %v564
      %693 = vmatprep.subr.mxu0 %v569
      %694 = vmatpush1.msra.mxu0 %v568
      %695 = vmatprep.subr.mxu0 %v573
      %696 = vmatpush1.msra.mxu0 %v572
      %697 = vmatprep.subr.mxu0 %v577
      %698 = vmatpush1.msra.mxu0 %v576
      %699 = vmatprep.subr.mxu0 %v581
      %700 = vmatpush1.msra.mxu0 %v580
      %701 = vmatprep.subr.mxu0 %v585
      %702 = vmatpush1.msra.mxu0 %v584
      %703 = vmatprep.subr.mxu0 %v589
      %704 = vmatpush1.msra.mxu0 %v588
      %705 = vmatprep.subr.mxu0 %v593
      %706 = vmatpush1.msra.mxu0 %v592
      %707 = vmatprep.subr.mxu0 %v597
      %708 = vmatpush1.msra.mxu0 %v596
      %709 = vmatprep.subr.mxu0 %v601
      %710 = vmatpush1.msra.mxu0 %v600
      %711 = vmatprep.subr.mxu0 %v605
      %712 = vmatpush1.msra.mxu0 %v604
      %713 = vmatprep.subr.mxu0 %v609
      %714 = vmatpush1.msra.mxu0 %v608
      %715 = vmatprep.subr.mxu0 %v613
      %716 = vmatpush1.msra.mxu0 %v612
      %717 = vmatprep.subr.mxu0 0.0
      %718 = vmatpush1.msra.mxu0 0.0
      %719 = vmatprep.subr.mxu0 0.0
      %720 = vmatpush1.msra.mxu0 0.0
      %721 = vmatprep.subr.mxu0 0.0
      %722 = vmatpush1.msra.mxu0 0.0
      %723 = vmatprep.subr.mxu0 0.0
      %724 = vmatpush1.msra.mxu0 0.0
      %725 = vmatprep.subr.mxu0 0.0
      %726 = vmatpush1.msra.mxu0 0.0
      %727 = vmatprep.subr.mxu0 0.0
      %728 = vmatpush1.msra.mxu0 0.0
      %729 = vmatprep.subr.mxu0 0.0
      %730 = vmatpush1.msra.mxu0 0.0
      %731 = vmatprep.subr.mxu0 0.0
      %732 = vmatpush1.msra.mxu0 0.0
      %733 = vmatprep.subr.mxu0 0.0
      %734 = vmatpush1.msra.mxu0 0.0
      %735 = vmatprep.subr.mxu0 0.0
      %736 = vmatpush1.msra.mxu0 0.0
      %737 = vmatprep.subr.mxu0 0.0
      %738 = vmatpush1.msra.mxu0 0.0
      %739 = vmatprep.subr.mxu0 0.0
      %740 = vmatpush1.msra.mxu0 0.0
      %741 = vmatprep.subr.mxu0 0.0
      %742 = vmatpush1.msra.mxu0 0.0
      %743 = vmatprep.subr.mxu0 0.0
      %744 = vmatpush1.msra.mxu0 0.0
      %745 = vmatprep.subr.mxu0 0.0
      %746 = vmatpush1.msra.mxu0 0.0
      %747 = vmatprep.subr.mxu0 0.0
      %748 = vmatpush1.msra.mxu0 0.0
      %749 = vmatprep.mubr.f32.mxu0 0.0
      %750 = vmatmul.mubr.f32.gmra.mrb[0].mxu0 %v541
      %v751 = vpop.f32.mrb[0].mxu0
      %v752 = vadd.f32 0.0, %v751
      %v753 = vpop.f32.mrb[0].mxu0
      %v754 = vadd.f32 0.0, %v753
      %755 = vdwg.mxu0
      %v756 = vadd.f32 %v546, %v681
      %v757 = vadd.f32 %v547, %v683
      %v758 = vadd.f32 %v548, %v752
      %v759 = vadd.f32 %v549, %v754
      %v760 = vxor.u32 %v756, 2147483648
      %v761 = vmul.f32 %v760, 1.442695
      %v762 = vpow.pop %v761
      %v763 = vadd.f32 %v762, 1.0
      %v764 = vrcp.pop %v763
      %v765 = vmul.f32 1.0, %v764
      %v766 = vxor.u32 %v757, 2147483648
      %v767 = vmul.f32 %v766, 1.442695
      %v768 = vpow.pop %v767
      %v769 = vadd.f32 %v768, 1.0
      %v770 = vrcp.pop %v769
      %v771 = vmul.f32 1.0, %v770
      %v772 = vtanh.pop %v758
      %v773 = vxor.u32 %v759, 2147483648
      %v774 = vmul.f32 %v773, 1.442695
      %v775 = vpow.pop %v774
      %v776 = vadd.f32 %v775, 1.0
      %v777 = vrcp.pop %v776
      %v778 = vmul.f32 1.0, %v777
      %v779 = vmul.f32 %v771, %v542
      %v780 = vmul.f32 %v765, %v772
      %v781 = vadd.f32 %v779, %v780
      %v782 = vtanh.pop %v781
      %v783 = vmul.f32 %v778, %v782
      %s784 = smul.u32 %s20, 3
      %p785 = scmp.lt.s32.totalorder %s784, 8
      %s786 = scalar_select %p785, 1, 0
      %v787 = vstv %s786
      %vm788 = vcmp.eq.s32.totalorder %v787, 1
      %v789 = vsel %vm788, %v783, %v541
      %v790 = vsel %vm788, %v781, %v542
      %791 = vst [vmem:[%s302] sm:$0xff] %v789
      %s792 = smul.u32 1, 4
      %s793 = smul.addr %s792, 8
      %s794 = scalar_lea.vmem [#allocation2], %s793
      %v795 = vld [vmem:[%s794] sm:$0xff]
      %v796 = vld [vmem:[%s794 + $0x8] sm:$0xff]
      %v797 = vld [vmem:[%s794 + $0x10] sm:$0xff]
      %v798 = vld [vmem:[%s794 + $0x18] sm:$0xff]
      %v799 = vld [vmem:[%s3] sm:$0xff]
      %v800 = vld [vmem:[%s3 + $0x8] sm:$0xff]
      %v801 = vld [vmem:[%s3 + $0x10] sm:$0xff]
      %v802 = vld [vmem:[%s3 + $0x18] sm:$0xff]
      %v803 = vld [vmem:[%s3 + $0x20] sm:$0xff]
      %v804 = vld [vmem:[%s3 + $0x28] sm:$0xff]
      %v805 = vld [vmem:[%s3 + $0x30] sm:$0xff]
      %v806 = vld [vmem:[%s3 + $0x38] sm:$0xff]
      %v807 = vld [vmem:[%s3 + $0x40] sm:$0xff]
      %v808 = vld [vmem:[%s3 + $0x48] sm:$0xff]
      %v809 = vld [vmem:[%s3 + $0x50] sm:$0xff]
      %v810 = vld [vmem:[%s3 + $0x58] sm:$0xff]
      %v811 = vld [vmem:[%s3 + $0x60] sm:$0xff]
      %v812 = vld [vmem:[%s3 + $0x68] sm:$0xff]
      %v813 = vld [vmem:[%s3 + $0x70] sm:$0xff]
      %v814 = vld [vmem:[%s3 + $0x78] sm:$0xff]
      %v815 = vld [vmem:[%s3 + $0x80] sm:$0xff]
      %v816 = vld [vmem:[%s3 + $0x88] sm:$0xff]
      %v817 = vld [vmem:[%s3 + $0x90] sm:$0xff]
      %v818 = vld [vmem:[%s3 + $0x98] sm:$0xff]
      %v819 = vld [vmem:[%s3 + $0xa0] sm:$0xff]
      %v820 = vld [vmem:[%s3 + $0xa8] sm:$0xff]
      %v821 = vld [vmem:[%s3 + $0xb0] sm:$0xff]
      %v822 = vld [vmem:[%s3 + $0xb8] sm:$0xff]
      %v823 = vld [vmem:[%s3 + $0xc0] sm:$0xff]
      %v824 = vld [vmem:[%s3 + $0xc8] sm:$0xff]
      %v825 = vld [vmem:[%s3 + $0xd0] sm:$0xff]
      %v826 = vld [vmem:[%s3 + $0xd8] sm:$0xff]
      %v827 = vld [vmem:[%s3 + $0xe0] sm:$0xff]
      %v828 = vld [vmem:[%s3 + $0xe8] sm:$0xff]
      %v829 = vld [vmem:[%s3 + $0xf0] sm:$0xff]
      %v830 = vld [vmem:[%s3 + $0xf8] sm:$0xff]
      %v831 = vld [vmem:[%s3 + $0x100] sm:$0xff]
      %v832 = vld [vmem:[%s3 + $0x108] sm:$0xff]
      %v833 = vld [vmem:[%s3 + $0x110] sm:$0xff]
      %v834 = vld [vmem:[%s3 + $0x118] sm:$0xff]
      %v835 = vld [vmem:[%s3 + $0x120] sm:$0xff]
      %v836 = vld [vmem:[%s3 + $0x128] sm:$0xff]
      %v837 = vld [vmem:[%s3 + $0x130] sm:$0xff]
      %v838 = vld [vmem:[%s3 + $0x138] sm:$0xff]
      %v839 = vld [vmem:[%s3 + $0x140] sm:$0xff]
      %v840 = vld [vmem:[%s3 + $0x148] sm:$0xff]
      %v841 = vld [vmem:[%s3 + $0x150] sm:$0xff]
      %v842 = vld [vmem:[%s3 + $0x158] sm:$0xff]
      %v843 = vld [vmem:[%s3 + $0x160] sm:$0xff]
      %v844 = vld [vmem:[%s3 + $0x168] sm:$0xff]
      %v845 = vld [vmem:[%s3 + $0x170] sm:$0xff]
      %v846 = vld [vmem:[%s3 + $0x178] sm:$0xff]
      %v847 = vld [vmem:[%s3 + $0x180] sm:$0xff]
      %v848 = vld [vmem:[%s3 + $0x188] sm:$0xff]
      %v849 = vld [vmem:[%s3 + $0x190] sm:$0xff]
      %v850 = vld [vmem:[%s3 + $0x198] sm:$0xff]
      %v851 = vld [vmem:[%s3 + $0x1a0] sm:$0xff]
      %v852 = vld [vmem:[%s3 + $0x1a8] sm:$0xff]
      %v853 = vld [vmem:[%s3 + $0x1b0] sm:$0xff]
      %v854 = vld [vmem:[%s3 + $0x1b8] sm:$0xff]
      %v855 = vld [vmem:[%s3 + $0x1c0] sm:$0xff]
      %v856 = vld [vmem:[%s3 + $0x1c8] sm:$0xff]
      %v857 = vld [vmem:[%s3 + $0x1d0] sm:$0xff]
      %v858 = vld [vmem:[%s3 + $0x1d8] sm:$0xff]
      %v859 = vld [vmem:[%s3 + $0x1e0] sm:$0xff]
      %v860 = vld [vmem:[%s3 + $0x1e8] sm:$0xff]
      %v861 = vld [vmem:[%s3 + $0x1f0] sm:$0xff]
      %v862 = vld [vmem:[%s3 + $0x1f8] sm:$0xff]
      %863 = vmatprep.subr.mxu0 %v800
      %864 = vmatpush1.msra.mxu0 %v799
      %865 = vmatprep.subr.mxu0 %v804
      %866 = vmatpush1.msra.mxu0 %v803
      %867 = vmatprep.subr.mxu0 %v808
      %868 = vmatpush1.msra.mxu0 %v807
      %869 = vmatprep.subr.mxu0 %v812
      %870 = vmatpush1.msra.mxu0 %v811
      %871 = vmatprep.subr.mxu0 %v816
      %872 = vmatpush1.msra.mxu0 %v815
      %873 = vmatprep.subr.mxu0 %v820
      %874 = vmatpush1.msra.mxu0 %v819
      %875 = vmatprep.subr.mxu0 %v824
      %876 = vmatpush1.msra.mxu0 %v823
      %877 = vmatprep.subr.mxu0 %v828
      %878 = vmatpush1.msra.mxu0 %v827
      %879 = vmatprep.subr.mxu0 %v832
      %880 = vmatpush1.msra.mxu0 %v831
      %881 = vmatprep.subr.mxu0 %v836
      %882 = vmatpush1.msra.mxu0 %v835
      %883 = vmatprep.subr.mxu0 %v840
      %884 = vmatpush1.msra.mxu0 %v839
      %885 = vmatprep.subr.mxu0 %v844
      %886 = vmatpush1.msra.mxu0 %v843
      %887 = vmatprep.subr.mxu0 %v848
      %888 = vmatpush1.msra.mxu0 %v847
      %889 = vmatprep.subr.mxu0 %v852
      %890 = vmatpush1.msra.mxu0 %v851
      %891 = vmatprep.subr.mxu0 %v856
      %892 = vmatpush1.msra.mxu0 %v855
      %893 = vmatprep.subr.mxu0 %v860
      %894 = vmatpush1.msra.mxu0 %v859
      %895 = vmatprep.subr.mxu0 0.0
      %896 = vmatpush1.msra.mxu0 0.0
      %897 = vmatprep.subr.mxu0 0.0
      %898 = vmatpush1.msra.mxu0 0.0
      %899 = vmatprep.subr.mxu0 0.0
      %900 = vmatpush1.msra.mxu0 0.0
      %901 = vmatprep.subr.mxu0 0.0
      %902 = vmatpush1.msra.mxu0 0.0
      %903 = vmatprep.subr.mxu0 0.0
      %904 = vmatpush1.msra.mxu0 0.0
      %905 = vmatprep.subr.mxu0 0.0
      %906 = vmatpush1.msra.mxu0 0.0
      %907 = vmatprep.subr.mxu0 0.0
      %908 = vmatpush1.msra.mxu0 0.0
      %909 = vmatprep.subr.mxu0 0.0
      %910 = vmatpush1.msra.mxu0 0.0
      %911 = vmatprep.subr.mxu0 0.0
      %912 = vmatpush1.msra.mxu0 0.0
      %913 = vmatprep.subr.mxu0 0.0
      %914 = vmatpush1.msra.mxu0 0.0
      %915 = vmatprep.subr.mxu0 0.0
      %916 = vmatpush1.msra.mxu0 0.0
      %917 = vmatprep.subr.mxu0 0.0
      %918 = vmatpush1.msra.mxu0 0.0
      %919 = vmatprep.subr.mxu0 0.0
      %920 = vmatpush1.msra.mxu0 0.0
      %921 = vmatprep.subr.mxu0 0.0
      %922 = vmatpush1.msra.mxu0 0.0
      %923 = vmatprep.subr.mxu0 0.0
      %924 = vmatpush1.msra.mxu0 0.0
      %925 = vmatprep.subr.mxu0 0.0
      %926 = vmatpush1.msra.mxu0 0.0
      %927 = vmatprep.mubr.f32.mxu0 0.0
      %928 = vmatmul.mubr.f32.gmra.mrb[0].mxu0 %v789
      %v929 = vpop.f32.mrb[0].mxu0
      %v930 = vadd.f32 0.0, %v929
      %v931 = vpop.f32.mrb[0].mxu0
      %v932 = vadd.f32 0.0, %v931
      %933 = vdwg.mxu0
      %934 = vmatprep.subr.mxu0 %v802
      %935 = vmatpush1.msra.mxu0 %v801
      %936 = vmatprep.subr.mxu0 %v806
      %937 = vmatpush1.msra.mxu0 %v805
      %938 = vmatprep.subr.mxu0 %v810
      %939 = vmatpush1.msra.mxu0 %v809
      %940 = vmatprep.subr.mxu0 %v814
      %941 = vmatpush1.msra.mxu0 %v813
      %942 = vmatprep.subr.mxu0 %v818
      %943 = vmatpush1.msra.mxu0 %v817
      %944 = vmatprep.subr.mxu0 %v822
      %945 = vmatpush1.msra.mxu0 %v821
      %946 = vmatprep.subr.mxu0 %v826
      %947 = vmatpush1.msra.mxu0 %v825
      %948 = vmatprep.subr.mxu0 %v830
      %949 = vmatpush1.msra.mxu0 %v829
      %950 = vmatprep.subr.mxu0 %v834
      %951 = vmatpush1.msra.mxu0 %v833
      %952 = vmatprep.subr.mxu0 %v838
      %953 = vmatpush1.msra.mxu0 %v837
      %954 = vmatprep.subr.mxu0 %v842
      %955 = vmatpush1.msra.mxu0 %v841
      %956 = vmatprep.subr.mxu0 %v846
      %957 = vmatpush1.msra.mxu0 %v845
      %958 = vmatprep.subr.mxu0 %v850
      %959 = vmatpush1.msra.mxu0 %v849
      %960 = vmatprep.subr.mxu0 %v854
      %961 = vmatpush1.msra.mxu0 %v853
      %962 = vmatprep.subr.mxu0 %v858
      %963 = vmatpush1.msra.mxu0 %v857
      %964 = vmatprep.subr.mxu0 %v862
      %965 = vmatpush1.msra.mxu0 %v861
      %966 = vmatprep.subr.mxu0 0.0
      %967 = vmatpush1.msra.mxu0 0.0
      %968 = vmatprep.subr.mxu0 0.0
      %969 = vmatpush1.msra.mxu0 0.0
      %970 = vmatprep.subr.mxu0 0.0
      %971 = vmatpush1.msra.mxu0 0.0
      %972 = vmatprep.subr.mxu0 0.0
      %973 = vmatpush1.msra.mxu0 0.0
      %974 = vmatprep.subr.mxu0 0.0
      %975 = vmatpush1.msra.mxu0 0.0
      %976 = vmatprep.subr.mxu0 0.0
      %977 = vmatpush1.msra.mxu0 0.0
      %978 = vmatprep.subr.mxu0 0.0
      %979 = vmatpush1.msra.mxu0 0.0
      %980 = vmatprep.subr.mxu0 0.0
      %981 = vmatpush1.msra.mxu0 0.0
      %982 = vmatprep.subr.mxu0 0.0
      %983 = vmatpush1.msra.mxu0 0.0
      %984 = vmatprep.subr.mxu0 0.0
      %985 = vmatpush1.msra.mxu0 0.0
      %986 = vmatprep.subr.mxu0 0.0
      %987 = vmatpush1.msra.mxu0 0.0
      %988 = vmatprep.subr.mxu0 0.0
      %989 = vmatpush1.msra.mxu0 0.0
      %990 = vmatprep.subr.mxu0 0.0
      %991 = vmatpush1.msra.mxu0 0.0
      %992 = vmatprep.subr.mxu0 0.0
      %993 = vmatpush1.msra.mxu0 0.0
      %994 = vmatprep.subr.mxu0 0.0
      %995 = vmatpush1.msra.mxu0 0.0
      %996 = vmatprep.subr.mxu0 0.0
      %997 = vmatpush1.msra.mxu0 0.0
      %998 = vmatprep.mubr.f32.mxu0 0.0
      %999 = vmatmul.mubr.f32.gmra.mrb[0].mxu0 %v789
      %v1000 = vpop.f32.mrb[0].mxu0
      %v1001 = vadd.f32 0.0, %v1000
      %v1002 = vpop.f32.mrb[0].mxu0
      %v1003 = vadd.f32 0.0, %v1002
      %1004 = vdwg.mxu0
      %v1005 = vadd.f32 %v795, %v930
      %v1006 = vadd.f32 %v796, %v932
      %v1007 = vadd.f32 %v797, %v1001
      %v1008 = vadd.f32 %v798, %v1003
      %v1009 = vxor.u32 %v1005, 2147483648
      %v1010 = vmul.f32 %v1009, 1.442695
      %v1011 = vpow.pop %v1010
      %v1012 = vadd.f32 %v1011, 1.0
      %v1013 = vrcp.pop %v1012
      %v1014 = vmul.f32 1.0, %v1013
      %v1015 = vxor.u32 %v1006, 2147483648
      %v1016 = vmul.f32 %v1015, 1.442695
      %v1017 = vpow.pop %v1016
      %v1018 = vadd.f32 %v1017, 1.0
      %v1019 = vrcp.pop %v1018
      %v1020 = vmul.f32 1.0, %v1019
      %v1021 = vtanh.pop %v1007
      %v1022 = vxor.u32 %v1008, 2147483648
      %v1023 = vmul.f32 %v1022, 1.442695
      %v1024 = vpow.pop %v1023
      %v1025 = vadd.f32 %v1024, 1.0
      %v1026 = vrcp.pop %v1025
      %v1027 = vmul.f32 1.0, %v1026
      %v1028 = vmul.f32 %v1020, %v790
      %v1029 = vmul.f32 %v1014, %v1021
      %v1030 = vadd.f32 %v1028, %v1029
      %v1031 = vtanh.pop %v1030
      %v1032 = vmul.f32 %v1027, %v1031
      %s1033 = sadd.s32 %s784, 1
      %p1034 = scmp.lt.s32.totalorder %s1033, 8
      %s1035 = scalar_select %p1034, 1, 0
      %v1036 = vstv %s1035
      %vm1037 = vcmp.eq.s32.totalorder %v1036, 1
      %v1038 = vsel %vm1037, %v1032, %v789
      %v1039 = vsel %vm1037, %v1030, %v790
      %s1040 = scalar_lea.vmem %s302, 8
      %1041 = vst [vmem:[%s1040] sm:$0xff] %v1038
      %s1042 = smul.u32 2, 4
      %s1043 = smul.addr %s1042, 8
      %s1044 = scalar_lea.vmem [#allocation2], %s1043
      %v1045 = vld [vmem:[%s1044] sm:$0xff]
      %v1046 = vld [vmem:[%s1044 + $0x8] sm:$0xff]
      %v1047 = vld [vmem:[%s1044 + $0x10] sm:$0xff]
      %v1048 = vld [vmem:[%s1044 + $0x18] sm:$0xff]
      %v1049 = vld [vmem:[%s3] sm:$0xff]
      %v1050 = vld [vmem:[%s3 + $0x8] sm:$0xff]
      %v1051 = vld [vmem:[%s3 + $0x10] sm:$0xff]
      %v1052 = vld [vmem:[%s3 + $0x18] sm:$0xff]
      %v1053 = vld [vmem:[%s3 + $0x20] sm:$0xff]
      %v1054 = vld [vmem:[%s3 + $0x28] sm:$0xff]
      %v1055 = vld [vmem:[%s3 + $0x30] sm:$0xff]
      %v1056 = vld [vmem:[%s3 + $0x38] sm:$0xff]
      %v1057 = vld [vmem:[%s3 + $0x40] sm:$0xff]
      %v1058 = vld [vmem:[%s3 + $0x48] sm:$0xff]
      %v1059 = vld [vmem:[%s3 + $0x50] sm:$0xff]
      %v1060 = vld [vmem:[%s3 + $0x58] sm:$0xff]
      %v1061 = vld [vmem:[%s3 + $0x60] sm:$0xff]
      %v1062 = vld [vmem:[%s3 + $0x68] sm:$0xff]
      %v1063 = vld [vmem:[%s3 + $0x70] sm:$0xff]
      %v1064 = vld [vmem:[%s3 + $0x78] sm:$0xff]
      %v1065 = vld [vmem:[%s3 + $0x80] sm:$0xff]
      %v1066 = vld [vmem:[%s3 + $0x88] sm:$0xff]
      %v1067 = vld [vmem:[%s3 + $0x90] sm:$0xff]
      %v1068 = vld [vmem:[%s3 + $0x98] sm:$0xff]
      %v1069 = vld [vmem:[%s3 + $0xa0] sm:$0xff]
      %v1070 = vld [vmem:[%s3 + $0xa8] sm:$0xff]
      %v1071 = vld [vmem:[%s3 + $0xb0] sm:$0xff]
      %v1072 = vld [vmem:[%s3 + $0xb8] sm:$0xff]
      %v1073 = vld [vmem:[%s3 + $0xc0] sm:$0xff]
      %v1074 = vld [vmem:[%s3 + $0xc8] sm:$0xff]
      %v1075 = vld [vmem:[%s3 + $0xd0] sm:$0xff]
      %v1076 = vld [vmem:[%s3 + $0xd8] sm:$0xff]
      %v1077 = vld [vmem:[%s3 + $0xe0] sm:$0xff]
      %v1078 = vld [vmem:[%s3 + $0xe8] sm:$0xff]
      %v1079 = vld [vmem:[%s3 + $0xf0] sm:$0xff]
      %v1080 = vld [vmem:[%s3 + $0xf8] sm:$0xff]
      %v1081 = vld [vmem:[%s3 + $0x100] sm:$0xff]
      %v1082 = vld [vmem:[%s3 + $0x108] sm:$0xff]
      %v1083 = vld [vmem:[%s3 + $0x110] sm:$0xff]
      %v1084 = vld [vmem:[%s3 + $0x118] sm:$0xff]
      %v1085 = vld [vmem:[%s3 + $0x120] sm:$0xff]
      %v1086 = vld [vmem:[%s3 + $0x128] sm:$0xff]
      %v1087 = vld [vmem:[%s3 + $0x130] sm:$0xff]
      %v1088 = vld [vmem:[%s3 + $0x138] sm:$0xff]
      %v1089 = vld [vmem:[%s3 + $0x140] sm:$0xff]
      %v1090 = vld [vmem:[%s3 + $0x148] sm:$0xff]
      %v1091 = vld [vmem:[%s3 + $0x150] sm:$0xff]
      %v1092 = vld [vmem:[%s3 + $0x158] sm:$0xff]
      %v1093 = vld [vmem:[%s3 + $0x160] sm:$0xff]
      %v1094 = vld [vmem:[%s3 + $0x168] sm:$0xff]
      %v1095 = vld [vmem:[%s3 + $0x170] sm:$0xff]
      %v1096 = vld [vmem:[%s3 + $0x178] sm:$0xff]
      %v1097 = vld [vmem:[%s3 + $0x180] sm:$0xff]
      %v1098 = vld [vmem:[%s3 + $0x188] sm:$0xff]
      %v1099 = vld [vmem:[%s3 + $0x190] sm:$0xff]
      %v1100 = vld [vmem:[%s3 + $0x198] sm:$0xff]
      %v1101 = vld [vmem:[%s3 + $0x1a0] sm:$0xff]
      %v1102 = vld [vmem:[%s3 + $0x1a8] sm:$0xff]
      %v1103 = vld [vmem:[%s3 + $0x1b0] sm:$0xff]
      %v1104 = vld [vmem:[%s3 + $0x1b8] sm:$0xff]
      %v1105 = vld [vmem:[%s3 + $0x1c0] sm:$0xff]
      %v1106 = vld [vmem:[%s3 + $0x1c8] sm:$0xff]
      %v1107 = vld [vmem:[%s3 + $0x1d0] sm:$0xff]
      %v1108 = vld [vmem:[%s3 + $0x1d8] sm:$0xff]
      %v1109 = vld [vmem:[%s3 + $0x1e0] sm:$0xff]
      %v1110 = vld [vmem:[%s3 + $0x1e8] sm:$0xff]
      %v1111 = vld [vmem:[%s3 + $0x1f0] sm:$0xff]
      %v1112 = vld [vmem:[%s3 + $0x1f8] sm:$0xff]
      %1113 = vmatprep.subr.mxu0 %v1050
      %1114 = vmatpush1.msra.mxu0 %v1049
      %1115 = vmatprep.subr.mxu0 %v1054
      %1116 = vmatpush1.msra.mxu0 %v1053
      %1117 = vmatprep.subr.mxu0 %v1058
      %1118 = vmatpush1.msra.mxu0 %v1057
      %1119 = vmatprep.subr.mxu0 %v1062
      %1120 = vmatpush1.msra.mxu0 %v1061
      %1121 = vmatprep.subr.mxu0 %v1066
      %1122 = vmatpush1.msra.mxu0 %v1065
      %1123 = vmatprep.subr.mxu0 %v1070
      %1124 = vmatpush1.msra.mxu0 %v1069
      %1125 = vmatprep.subr.mxu0 %v1074
      %1126 = vmatpush1.msra.mxu0 %v1073
      %1127 = vmatprep.subr.mxu0 %v1078
      %1128 = vmatpush1.msra.mxu0 %v1077
      %1129 = vmatprep.subr.mxu0 %v1082
      %1130 = vmatpush1.msra.mxu0 %v1081
      %1131 = vmatprep.subr.mxu0 %v1086
      %1132 = vmatpush1.msra.mxu0 %v1085
      %1133 = vmatprep.subr.mxu0 %v1090
      %1134 = vmatpush1.msra.mxu0 %v1089
      %1135 = vmatprep.subr.mxu0 %v1094
      %1136 = vmatpush1.msra.mxu0 %v1093
      %1137 = vmatprep.subr.mxu0 %v1098
      %1138 = vmatpush1.msra.mxu0 %v1097
      %1139 = vmatprep.subr.mxu0 %v1102
      %1140 = vmatpush1.msra.mxu0 %v1101
      %1141 = vmatprep.subr.mxu0 %v1106
      %1142 = vmatpush1.msra.mxu0 %v1105
      %1143 = vmatprep.subr.mxu0 %v1110
      %1144 = vmatpush1.msra.mxu0 %v1109
      %1145 = vmatprep.subr.mxu0 0.0
      %1146 = vmatpush1.msra.mxu0 0.0
      %1147 = vmatprep.subr.mxu0 0.0
      %1148 = vmatpush1.msra.mxu0 0.0
      %1149 = vmatprep.subr.mxu0 0.0
      %1150 = vmatpush1.msra.mxu0 0.0
      %1151 = vmatprep.subr.mxu0 0.0
      %1152 = vmatpush1.msra.mxu0 0.0
      %1153 = vmatprep.subr.mxu0 0.0
      %1154 = vmatpush1.msra.mxu0 0.0
      %1155 = vmatprep.subr.mxu0 0.0
      %1156 = vmatpush1.msra.mxu0 0.0
      %1157 = vmatprep.subr.mxu0 0.0
      %1158 = vmatpush1.msra.mxu0 0.0
      %1159 = vmatprep.subr.mxu0 0.0
      %1160 = vmatpush1.msra.mxu0 0.0
      %1161 = vmatprep.subr.mxu0 0.0
      %1162 = vmatpush1.msra.mxu0 0.0
      %1163 = vmatprep.subr.mxu0 0.0
      %1164 = vmatpush1.msra.mxu0 0.0
      %1165 = vmatprep.subr.mxu0 0.0
      %1166 = vmatpush1.msra.mxu0 0.0
      %1167 = vmatprep.subr.mxu0 0.0
      %1168 = vmatpush1.msra.mxu0 0.0
      %1169 = vmatprep.subr.mxu0 0.0
      %1170 = vmatpush1.msra.mxu0 0.0
      %1171 = vmatprep.subr.mxu0 0.0
      %1172 = vmatpush1.msra.mxu0 0.0
      %1173 = vmatprep.subr.mxu0 0.0
      %1174 = vmatpush1.msra.mxu0 0.0
      %1175 = vmatprep.subr.mxu0 0.0
      %1176 = vmatpush1.msra.mxu0 0.0
      %1177 = vmatprep.mubr.f32.mxu0 0.0
      %1178 = vmatmul.mubr.f32.gmra.mrb[0].mxu0 %v1038
      %v1179 = vpop.f32.mrb[0].mxu0
      %v1180 = vadd.f32 0.0, %v1179
      %v1181 = vpop.f32.mrb[0].mxu0
      %v1182 = vadd.f32 0.0, %v1181
      %1183 = vdwg.mxu0
      %1184 = vmatprep.subr.mxu0 %v1052
      %1185 = vmatpush1.msra.mxu0 %v1051
      %1186 = vmatprep.subr.mxu0 %v1056
      %1187 = vmatpush1.msra.mxu0 %v1055
      %1188 = vmatprep.subr.mxu0 %v1060
      %1189 = vmatpush1.msra.mxu0 %v1059
      %1190 = vmatprep.subr.mxu0 %v1064
      %1191 = vmatpush1.msra.mxu0 %v1063
      %1192 = vmatprep.subr.mxu0 %v1068
      %1193 = vmatpush1.msra.mxu0 %v1067
      %1194 = vmatprep.subr.mxu0 %v1072
      %1195 = vmatpush1.msra.mxu0 %v1071
      %1196 = vmatprep.subr.mxu0 %v1076
      %1197 = vmatpush1.msra.mxu0 %v1075
      %1198 = vmatprep.subr.mxu0 %v1080
      %1199 = vmatpush1.msra.mxu0 %v1079
      %1200 = vmatprep.subr.mxu0 %v1084
      %1201 = vmatpush1.msra.mxu0 %v1083
      %1202 = vmatprep.subr.mxu0 %v1088
      %1203 = vmatpush1.msra.mxu0 %v1087
      %1204 = vmatprep.subr.mxu0 %v1092
      %1205 = vmatpush1.msra.mxu0 %v1091
      %1206 = vmatprep.subr.mxu0 %v1096
      %1207 = vmatpush1.msra.mxu0 %v1095
      %1208 = vmatprep.subr.mxu0 %v1100
      %1209 = vmatpush1.msra.mxu0 %v1099
      %1210 = vmatprep.subr.mxu0 %v1104
      %1211 = vmatpush1.msra.mxu0 %v1103
      %1212 = vmatprep.subr.mxu0 %v1108
      %1213 = vmatpush1.msra.mxu0 %v1107
      %1214 = vmatprep.subr.mxu0 %v1112
      %1215 = vmatpush1.msra.mxu0 %v1111
      %1216 = vmatprep.subr.mxu0 0.0
      %1217 = vmatpush1.msra.mxu0 0.0
      %1218 = vmatprep.subr.mxu0 0.0
      %1219 = vmatpush1.msra.mxu0 0.0
      %1220 = vmatprep.subr.mxu0 0.0
      %1221 = vmatpush1.msra.mxu0 0.0
      %1222 = vmatprep.subr.mxu0 0.0
      %1223 = vmatpush1.msra.mxu0 0.0
      %1224 = vmatprep.subr.mxu0 0.0
      %1225 = vmatpush1.msra.mxu0 0.0
      %1226 = vmatprep.subr.mxu0 0.0
      %1227 = vmatpush1.msra.mxu0 0.0
      %1228 = vmatprep.subr.mxu0 0.0
      %1229 = vmatpush1.msra.mxu0 0.0
      %1230 = vmatprep.subr.mxu0 0.0
      %1231 = vmatpush1.msra.mxu0 0.0
      %1232 = vmatprep.subr.mxu0 0.0
      %1233 = vmatpush1.msra.mxu0 0.0
      %1234 = vmatprep.subr.mxu0 0.0
      %1235 = vmatpush1.msra.mxu0 0.0
      %1236 = vmatprep.subr.mxu0 0.0
      %1237 = vmatpush1.msra.mxu0 0.0
      %1238 = vmatprep.subr.mxu0 0.0
      %1239 = vmatpush1.msra.mxu0 0.0
      %1240 = vmatprep.subr.mxu0 0.0
      %1241 = vmatpush1.msra.mxu0 0.0
      %1242 = vmatprep.subr.mxu0 0.0
      %1243 = vmatpush1.msra.mxu0 0.0
      %1244 = vmatprep.subr.mxu0 0.0
      %1245 = vmatpush1.msra.mxu0 0.0
      %1246 = vmatprep.subr.mxu0 0.0
      %1247 = vmatpush1.msra.mxu0 0.0
      %1248 = vmatprep.mubr.f32.mxu0 0.0
      %1249 = vmatmul.mubr.f32.gmra.mrb[0].mxu0 %v1038
      %v1250 = vpop.f32.mrb[0].mxu0
      %v1251 = vadd.f32 0.0, %v1250
      %v1252 = vpop.f32.mrb[0].mxu0
      %v1253 = vadd.f32 0.0, %v1252
      %1254 = vdwg.mxu0
      %v1255 = vadd.f32 %v1045, %v1180
      %v1256 = vadd.f32 %v1046, %v1182
      %v1257 = vadd.f32 %v1047, %v1251
      %v1258 = vadd.f32 %v1048, %v1253
      %v1259 = vxor.u32 %v1255, 2147483648
      %v1260 = vmul.f32 %v1259, 1.442695
      %v1261 = vpow.pop %v1260
      %v1262 = vadd.f32 %v1261, 1.0
      %v1263 = vrcp.pop %v1262
      %v1264 = vmul.f32 1.0, %v1263
      %v1265 = vxor.u32 %v1256, 2147483648
      %v1266 = vmul.f32 %v1265, 1.442695
      %v1267 = vpow.pop %v1266
      %v1268 = vadd.f32 %v1267, 1.0
      %v1269 = vrcp.pop %v1268
      %v1270 = vmul.f32 1.0, %v1269
      %v1271 = vtanh.pop %v1257
      %v1272 = vxor.u32 %v1258, 2147483648
      %v1273 = vmul.f32 %v1272, 1.442695
      %v1274 = vpow.pop %v1273
      %v1275 = vadd.f32 %v1274, 1.0
      %v1276 = vrcp.pop %v1275
      %v1277 = vmul.f32 1.0, %v1276
      %v1278 = vmul.f32 %v1270, %v1039
      %v1279 = vmul.f32 %v1264, %v1271
      %v1280 = vadd.f32 %v1278, %v1279
      %v1281 = vtanh.pop %v1280
      %v1282 = vmul.f32 %v1277, %v1281
      %s1283 = sadd.s32 %s784, 2
      %p1284 = scmp.lt.s32.totalorder %s1283, 8
      %s1285 = scalar_select %p1284, 1, 0
      %v1286 = vstv %s1285
      %vm1287 = vcmp.eq.s32.totalorder %v1286, 1
      %v1288 = vsel %vm1287, %v1282, %v1038
      %v1289 = vsel %vm1287, %v1280, %v1039
      %s1290 = scalar_lea.vmem %s302, 16
      %1291 = vst [vmem:[%s1290] sm:$0xff] %v1288
      %1292 = vst [vmem:[#allocation3] sm:$0xff] %v1288
      %1293 = vst [vmem:[#allocation4] sm:$0xff] %v1289
      %p1294 = scmp.eq.s32.totalorder %s20, 2
      // Predicated region
      $region49: #{rnn_model_forward.2} parent=43 // pred_check
        %p1295 = pneg %p1294
      $region50: #{rnn_model_forward.2} parent=43 // pred_check_branch
        %1297 = sbr.rel (%p1295) target = $region52
      $region51: #{rnn_model_forward.2} parent=43 // pred_region
        %1298 = vst [vmem:[%s7] sm:$0xff] %v1288
        %1299 = vst [vmem:[%s8] sm:$0xff] %v1289
      $region52: #{rnn_model_forward.2} parent=43 // pred_fallthru
        _
      %s1300 = smul.u32 3, %s20
      %p1301 = scmp.lt.s32.totalorder %s1300, 8
      %s1302 = scalar_select %p1301, %s1300, 8
      %s1303 = smul.addr %s1302, 8
      %s1304 = scalar_lea.vmem %s6, %s1303
      // Predicated region
      $region53: #{rnn_model_forward.2} parent=43 // pred_check
        %p1305 = pneg %p169
      $region54: #{rnn_model_forward.2} parent=43 // pred_check_branch
        %1307 = sbr.rel (%p1305) target = $region56
      $region55: #{rnn_model_forward.2} parent=43 // pred_region
        %s1308 = smul.u32 3, %s20
      $region56: #{rnn_model_forward.2} parent=43 // pred_fallthru
        _
      // Predicated region
      $region57: #{rnn_model_forward.2} parent=43 // pred_check
        %p1309 = pneg %p190
      $region58: #{rnn_model_forward.2} parent=43 // pred_check_branch
        %1311 = sbr.rel (%p1309) target = $region60
      $region59: #{rnn_model_forward.2} parent=43 // pred_region
        _
      $region60: #{rnn_model_forward.2} parent=43 // pred_fallthru
        _
      // Predicated region
      $region61: #{rnn_model_forward.2} parent=43 // pred_check
        %p1312 = pneg %p211
      $region62: #{rnn_model_forward.2} parent=43 // pred_check_branch
        %1314 = sbr.rel (%p1312) target = $region64
      $region63: #{rnn_model_forward.2} parent=43 // pred_region
        _
      $region64: #{rnn_model_forward.2} parent=43 // pred_fallthru
        _
      // Predicated region
      $region65: #{rnn_model_forward.2} parent=43 // pred_check
        %p1315 = pneg %p190
      $region66: #{rnn_model_forward.2} parent=43 // pred_check_branch
        %1317 = sbr.rel (%p1315) target = $region68
      $region67: #{rnn_model_forward.2} parent=43 // pred_region
        _
      $region68: #{rnn_model_forward.2} parent=43 // pred_fallthru
        _
      // Predicated region
      $region69: #{rnn_model_forward.2} parent=43 // pred_check
        %p1318 = pneg %p211
      $region70: #{rnn_model_forward.2} parent=43 // pred_check_branch
        %1320 = sbr.rel (%p1318) target = $region72
      $region71: #{rnn_model_forward.2} parent=43 // pred_region
        _
      $region72: #{rnn_model_forward.2} parent=43 // pred_fallthru
        _
    $region44: #{rnn_model_forward.2} parent=5 // pred_fallthru
      _
    %p1321 = scmp.le.s32.totalorder 2, %s15
    // Predicated region
    $region73: #{rnn_model_forward.2} parent=5 // pred_check
      %p1322 = pneg %p1321
    $region74: #{rnn_model_forward.2} parent=5 // pred_check_branch
      %1324 = sbr.rel (%p1322) target = $region76
    $region75: #{rnn_model_forward.2} parent=5 // pred_region
      %s1325 = ssub.s32 %s15, 2
      // Predicated region
      $region77: #{rnn_model_forward.2} parent=75 // pred_check
        %p1326 = pneg %p175
      $region78: #{rnn_model_forward.2} parent=75 // pred_check_branch
        %1328 = sbr.rel (%p1326) target = $region80
      $region79: #{rnn_model_forward.2} parent=75 // pred_region
        %s1329 = smul.u32 3, %s21
        %p1330 = scmp.lt.s32.totalorder %s1329, 8
        %s1331 = scalar_select %p1330, %s1329, 8
        %s1332 = smul.addr %s1331, 8
        %s1333 = scalar_lea.vmem %s6, %s1332
      $region80: #{rnn_model_forward.2} parent=75 // pred_fallthru
        _
    $region76: #{rnn_model_forward.2} parent=5 // pred_fallthru
      _
  $region6: #{rnn_model_forward.2} parent=0 // loop_footer
    %s19 = sadd.s32 1, %s15
  $region7: #{rnn_model_forward.2} parent=0 // loop_footer_branch
    %14 = sbr.rel target = $region3
  $region8: #{rnn_model_forward.2} parent=0 // loop_exit
    _

</llo_original>
